<compile_context>
chip_gen: v5e
topology: v5e:2x2
jax: 0.10.0
libtpu: 0.0.40
codegen_flags: <defaults>
</compile_context>

<pallas_src>
import functools

import jax
import jax.numpy as jnp
from jax.experimental import pallas as pl
from jax.experimental.pallas import tpu as pltpu


# ----------------------------- Pallas kernel --------------------------------

def _layernorm(v, gamma, beta, eps=1e-5):
    mu = jnp.mean(v, axis=-1, keepdims=True)
    var = jnp.mean((v - mu) ** 2, axis=-1, keepdims=True)
    return (v - mu) * jax.lax.rsqrt(var + eps) * gamma + beta


def encoder_stack_kernel(
    x_ref,                                   # (Bb, S, D)      f32
    wqkv_ref, bqkv_ref,                      # (1, D, 3D) cdt, (1, 1, 3D) f32
    wo_ref, bo_ref,                          # (1, D, D)  cdt, (1, 1, D)  f32
    w1_ref, b1_ref,                          # (1, D, Dff) cdt,(1, 1, Dff) f32
    w2_ref, b2_ref,                          # (1, Dff, D) cdt,(1, 1, D)  f32
    g1_ref, be1_ref, g2_ref, be2_ref,        # (1, 1, D) f32 each
    out_ref,                                 # (Bb, S, D)      f32 (layer carry)
    attn_ref,                                # (Bb, H, S, S)   attn_dtype
    inter_ref=None,                          # (Bb, S, D)      f32 (optional)
    *, num_heads, compute_dtype,
):
    layer = pl.program_id(1)
    Bb, S, D = out_ref.shape
    H = num_heads
    dh = D // H
    cdt = compute_dtype

    # Keep the activation resident in the output VMEM block across the layer
    # ("arbitrary") grid axis; seed it from the input on the first layer.
    @pl.when(layer == 0)
    def _():
        out_ref[...] = x_ref[...]

    # Batch-folded 2-D activation for all dense matmuls: M = Bb*S rows.
    x2 = out_ref[...].reshape(Bb * S, D)                       # (M, D) f32

    # ---- sublayer 1: LayerNorm1 -> MHA -> residual (from the normalized x) --
    xn2 = _layernorm(x2, g1_ref[0], be1_ref[0])                # (M, D) f32
    xn_c = xn2.astype(cdt)

    # Fused, lane-dense QKV projection: ONE matmul, N = 3D.
    # (1/sqrt(dh) is already folded into the Q columns / bias at pack time.)
    qkv = jnp.dot(xn_c, wqkv_ref[0],
                  preferred_element_type=jnp.float32) + bqkv_ref[0]   # (M, 3D)

    # Per-batch-element attention (static loop; Bb is a compile-time constant).
    # TODO(synk): mask=None path only (the Encoder here is exercised with mask=None).
    ctx_rows = []
    for bb in range(Bb):
        qkv_b = qkv[bb * S:(bb + 1) * S, :]                    # (S, 3D)
        q = qkv_b[:, 0 * D:1 * D].reshape(S, H, dh).swapaxes(0, 1).astype(cdt)
        k = qkv_b[:, 1 * D:2 * D].reshape(S, H, dh).swapaxes(0, 1).astype(cdt)
        v = qkv_b[:, 2 * D:3 * D].reshape(S, H, dh).swapaxes(0, 1).astype(cdt)

        s = jnp.einsum("hqd,hkd->hqk", q, k,
                       preferred_element_type=jnp.float32)     # (H, S, S) f32
        s = s - jnp.max(s, axis=-1, keepdims=True)
        e = jnp.exp(s)
        # Exact reciprocal: emitted probabilities are a true softmax.
        p = e * pl.reciprocal(jnp.sum(e, axis=-1, keepdims=True), approx=False)
        attn_ref[bb] = p.astype(attn_ref.dtype)

        ctx = jnp.einsum("hqk,hkd->hqd", p.astype(cdt), v,
                         preferred_element_type=jnp.float32)   # (H, S, dh)
        # Head-major concat -> (S, D), matching torch's concat(heads) @ Wo.
        ctx_rows.append(ctx.swapaxes(0, 1).reshape(S, D))

    ctx2 = ctx_rows[0] if Bb == 1 else jnp.concatenate(ctx_rows, axis=0)  # (M, D)

    # Fused output projection: ONE matmul with contraction depth K = D.
    attn_out = jnp.dot(ctx2.astype(cdt), wo_ref[0],
                       preferred_element_type=jnp.float32) + bo_ref[0]    # (M, D)

    sub1 = xn2 + attn_out     # residual is from the *normalized* x (per module)

    # ---- sublayer 2: position-wise FFN (ReLU) -> residual -> LayerNorm2 -----
    h1 = jnp.dot(sub1.astype(cdt), w1_ref[0],
                 preferred_element_type=jnp.float32) + b1_ref[0]
    h1 = jnp.maximum(h1, 0.0)                                  # atv_fun = 'relu'
    ff = jnp.dot(h1.astype(cdt), w2_ref[0],
                 preferred_element_type=jnp.float32) + b2_ref[0]

    y2 = _layernorm(sub1 + ff, g2_ref[0], be2_ref[0])          # (M, D)
    y = y2.reshape(Bb, S, D)

    out_ref[...] = y
    if inter_ref is not None:
        inter_ref[...] = y


# ------------------------------ JAX wrapper ---------------------------------

def pack_encoder_params(layer_params, num_heads, compute_dtype=jnp.bfloat16):
    """Stack per-layer params along a layer axis with lane-dense layouts."""
    D = layer_params[0]["wq"].shape[0]
    dh = D // num_heads
    scale = 1.0 / float(dh) ** 0.5   # folded into WQ / BQ

    wqkv = jnp.stack([jnp.concatenate([p["wq"] * scale, p["wk"], p["wv"]], axis=1)
                      for p in layer_params], axis=0).astype(compute_dtype)  # (L, D, 3D)
    bqkv = jnp.stack([jnp.concatenate([p["bq"] * scale, p["bk"], p["bv"]], axis=1)
                      for p in layer_params], axis=0)                        # (L, 1, 3D)
    wo = jnp.stack([p["wo"] for p in layer_params], axis=0).astype(compute_dtype)  # (L, D, D)
    bo = jnp.stack([p["bo"] for p in layer_params], axis=0)                  # (L, 1, D)
    w1 = jnp.stack([p["w1"] for p in layer_params], axis=0).astype(compute_dtype)
    b1 = jnp.stack([p["b1"] for p in layer_params], axis=0)                  # (L, 1, Dff)
    w2 = jnp.stack([p["w2"] for p in layer_params], axis=0).astype(compute_dtype)
    b2 = jnp.stack([p["b2"] for p in layer_params], axis=0)
    g1 = jnp.stack([p["ln1_g"] for p in layer_params], axis=0)
    be1 = jnp.stack([p["ln1_b"] for p in layer_params], axis=0)
    g2 = jnp.stack([p["ln2_g"] for p in layer_params], axis=0)
    be2 = jnp.stack([p["ln2_b"] for p in layer_params], axis=0)
    return (wqkv, bqkv, wo, bo, w1, b1, w2, b2, g1, be1, g2, be2)


def _vmem_limit_bytes():
    """~3/4 of this chip's physical VMEM: ~48 MiB on v7x, ~96 MiB on v5e/v6e."""
    cap = 64 * 1024 * 1024  # conservative fallback (v7x per-TC VMEM)
    try:
        info = pltpu.get_tpu_info()
        cap = getattr(info, "vmem_capacity_bytes", cap) or cap
    except Exception:
        pass
    return int(min(cap * 3 // 4, 112 * 1024 * 1024))


def encoder_pallas(x, layer_params, num_heads, return_intermediate=False,
                   compute_dtype=jnp.bfloat16, attn_dtype=jnp.bfloat16,
                   block_b=None):
    """Mirrors Encoder.forward(inputs, mask=None) in eval mode (dropout = id).

    x: (B, S, D) float32.  Returns (out, {"encoder_layer{i}": (B, H, S, S)}).
    If return_intermediate, the first return value is (L, B, S, D).
    """
    B, S, D = x.shape
    L = len(layer_params)
    H = num_heads
    assert D % H == 0
    Dff = layer_params[0]["w1"].shape[1]

    if block_b is None:
        # Prefer >=2 evenly-sized batch blocks so both v7x TensorCores get work,
        # while still folding batch rows into the matmul M dimension.
        block_b = B // 2 if (B >= 2 and B % 2 == 0) else B
    assert B % block_b == 0, "batch must divide evenly into batch blocks"
    nb = B // block_b

    packed = pack_encoder_params(layer_params, num_heads, compute_dtype)

    lmap = lambda b, l: (l, 0, 0)
    in_specs = [
        pl.BlockSpec((block_b, S, D), lambda b, l: (b, 0, 0)),   # x
        pl.BlockSpec((1, D, 3 * D), lmap),                       # wqkv (fused, lane-dense)
        pl.BlockSpec((1, 1, 3 * D), lmap),                       # bqkv
        pl.BlockSpec((1, D, D), lmap),                           # wo
        pl.BlockSpec((1, 1, D), lmap),                           # bo
        pl.BlockSpec((1, D, Dff), lmap),                         # w1
        pl.BlockSpec((1, 1, Dff), lmap),                         # b1
        pl.BlockSpec((1, Dff, D), lmap),                         # w2
        pl.BlockSpec((1, 1, D), lmap),                           # b2
        pl.BlockSpec((1, 1, D), lmap),                           # ln1 gamma
        pl.BlockSpec((1, 1, D), lmap),                           # ln1 beta
        pl.BlockSpec((1, 1, D), lmap),                           # ln2 gamma
        pl.BlockSpec((1, 1, D), lmap),                           # ln2 beta
    ]

    out_specs = [
        pl.BlockSpec((block_b, S, D), lambda b, l: (b, 0, 0)),              # final out (VMEM carry)
        pl.BlockSpec((block_b, H, S, S), lambda b, l: (l * nb + b, 0, 0, 0)),  # attention probs
    ]
    out_shape = [
        jax.ShapeDtypeStruct((B, S, D), jnp.float32),
        jax.ShapeDtypeStruct((L * B, H, S, S), attn_dtype),
    ]
    if return_intermediate:
        out_specs.append(pl.BlockSpec((block_b, S, D), lambda b, l: (l * nb + b, 0, 0)))
        out_shape.append(jax.ShapeDtypeStruct((L * B, S, D), jnp.float32))

    kernel = functools.partial(encoder_stack_kernel, num_heads=H,
                               compute_dtype=compute_dtype)

    outs = pl.pallas_call(
        kernel,
        grid=(nb, L),                          # batch-blocks parallel, layers sequential
        in_specs=in_specs,
        out_specs=out_specs,
        out_shape=out_shape,
        compiler_params=pltpu.CompilerParams(
            dimension_semantics=("parallel", "arbitrary"),
            vmem_limit_bytes=_vmem_limit_bytes()),
    )(x, *packed)

    attn = outs[1].reshape(L, B, H, S, S)
    attention_weights = {f"encoder_layer{i + 1}": attn[i] for i in range(L)}
    if return_intermediate:
        return outs[2].reshape(L, B, S, D), attention_weights
    return outs[0], attention_weights


# ------------------------- pure-JAX reference (check) ------------------------

def _ref_layer(x, p, num_heads):
    def ln(v, g, b):
        mu = v.mean(-1, keepdims=True)
        var = ((v - mu) ** 2).mean(-1, keepdims=True)
        return (v - mu) / jnp.sqrt(var + 1e-5) * g + b

    B, S, D = x.shape
    dh = D // num_heads
    xn = ln(x, p["ln1_g"][0], p["ln1_b"][0])
    q = xn @ p["wq"] + p["bq"][0]
    k = xn @ p["wk"] + p["bk"][0]
    v = xn @ p["wv"] + p["bv"][0]
    qh = q.reshape(B, S, num_heads, dh).transpose(0, 2, 1, 3)
    kh = k.reshape(B, S, num_heads, dh).transpose(0, 2, 1, 3)
    vh = v.reshape(B, S, num_heads, dh).transpose(0, 2, 1, 3)
    s = jnp.einsum("bhqd,bhkd->bhqk", qh, kh) / jnp.sqrt(dh)
    w = jax.nn.softmax(s, axis=-1)
    ctx = jnp.einsum("bhqk,bhkd->bhqd", w, vh).transpose(0, 2, 1, 3).reshape(B, S, D)
    attn_out = ctx @ p["wo"] + p["bo"][0]
    sub1 = xn + attn_out
    ff = jnp.maximum(sub1 @ p["w1"] + p["b1"][0], 0.0) @ p["w2"] + p["b2"][0]
    return ln(sub1 + ff, p["ln2_g"][0], p["ln2_b"][0]), w


# --------------------------------- main --------------------------------------

def make_layer_params(key, d_model, d_ff):
    ks = jax.random.split(key, 10)
    init = lambda k, shape: (jax.random.normal(k, shape, jnp.float32) * 0.02)
    return {
        "wq": init(ks[0], (d_model, d_model)), "bq": jnp.zeros((1, d_model), jnp.float32),
        "wk": init(ks[1], (d_model, d_model)), "bk": jnp.zeros((1, d_model), jnp.float32),
        "wv": init(ks[2], (d_model, d_model)), "bv": jnp.zeros((1, d_model), jnp.float32),
        "wo": init(ks[3], (d_model, d_model)), "bo": jnp.zeros((1, d_model), jnp.float32),
        "w1": init(ks[4], (d_model, d_ff)),    "b1": jnp.zeros((1, d_ff), jnp.float32),
        "w2": init(ks[5], (d_ff, d_model)),    "b2": jnp.zeros((1, d_model), jnp.float32),
        "ln1_g": jnp.ones((1, d_model), jnp.float32), "ln1_b": jnp.zeros((1, d_model), jnp.float32),
        "ln2_g": jnp.ones((1, d_model), jnp.float32), "ln2_b": jnp.zeros((1, d_model), jnp.float32),
    }


if __name__ == "__main__":
    # Encoder config: d_model=32, num_layers=2, num_heads=4, d_ff=64,
    # atv_fun='relu', dropout=0.0 (eval), full_attention=True, mask=None.
    # B=4 with the default block_b=2 exercises both the batch-folded matmul
    # path (M = 2*8 rows per step) and a 2-way parallel batch grid axis.
    B, S, D, H, Dff, L = 4, 8, 32, 4, 64, 2

    root = jax.random.PRNGKey(0)
    kx, kp = jax.random.split(root)
    x = jax.random.normal(kx, (B, S, D), jnp.float32)
    layer_params = [make_layer_params(k, D, Dff) for k in jax.random.split(kp, L)]

    out, attn_ws = encoder_pallas(x, layer_params, num_heads=H)
    out = jax.block_until_ready(out)
    for v in attn_ws.values():
        jax.block_until_ready(v)

    # Correctness check against a pure-JAX f32 reference (kernel matmuls run in
    # bf16 with f32 accumulation; attention probs are emitted in bf16).
    xr = x
    for i, p in enumerate(layer_params):
        xr, wr = _ref_layer(xr, p, H)
        a = attn_ws[f"encoder_layer{i + 1}"].astype(jnp.float32)
        assert jnp.allclose(a, wr, atol=2e-2), "attn mismatch"
    assert jnp.allclose(out, xr, atol=3e-2), "output mismatch"

    print("KERNEL_OK")
</pallas_src>

<mosaic_0001>
module attributes {stable_mosaic.version = 11 : i64} {
  func.func @encoder_stack_kernel(%arg0: i32, %arg1: i32, %arg2: memref<2x8x32xf32, #tpu.memory_space<vmem>>, %arg3: memref<1x32x96xbf16, #tpu.memory_space<vmem>>, %arg4: memref<1x1x96xf32, #tpu.memory_space<vmem>>, %arg5: memref<1x32x32xbf16, #tpu.memory_space<vmem>>, %arg6: memref<1x1x32xf32, #tpu.memory_space<vmem>>, %arg7: memref<1x32x64xbf16, #tpu.memory_space<vmem>>, %arg8: memref<1x1x64xf32, #tpu.memory_space<vmem>>, %arg9: memref<1x64x32xbf16, #tpu.memory_space<vmem>>, %arg10: memref<1x1x32xf32, #tpu.memory_space<vmem>>, %arg11: memref<1x1x32xf32, #tpu.memory_space<vmem>>, %arg12: memref<1x1x32xf32, #tpu.memory_space<vmem>>, %arg13: memref<1x1x32xf32, #tpu.memory_space<vmem>>, %arg14: memref<1x1x32xf32, #tpu.memory_space<vmem>>, %arg15: memref<2x8x32xf32, #tpu.memory_space<vmem>>, %arg16: memref<2x4x8x8xbf16, #tpu.memory_space<vmem>>) attributes {dimension_semantics = [#tpu.dimension_semantics<parallel>, #tpu.dimension_semantics<arbitrary>], iteration_bounds = array<i64: 2, 2>, scalar_prefetch = 0 : i64, scratch_operands = 0 : i64, tpu.core_type = #tpu.core_type<tc>, window_params = [{transform_indices = @transform_0, window_bounds = array<i64: 2, 8, 32>}, {transform_indices = @transform_1, window_bounds = array<i64: 1, 32, 96>}, {transform_indices = @transform_2, window_bounds = array<i64: 1, 1, 96>}, {transform_indices = @transform_3, window_bounds = array<i64: 1, 32, 32>}, {transform_indices = @transform_4, window_bounds = array<i64: 1, 1, 32>}, {transform_indices = @transform_5, window_bounds = array<i64: 1, 32, 64>}, {transform_indices = @transform_6, window_bounds = array<i64: 1, 1, 64>}, {transform_indices = @transform_7, window_bounds = array<i64: 1, 64, 32>}, {transform_indices = @transform_8, window_bounds = array<i64: 1, 1, 32>}, {transform_indices = @transform_9, window_bounds = array<i64: 1, 1, 32>}, {transform_indices = @transform_10, window_bounds = array<i64: 1, 1, 32>}, {transform_indices = @transform_11, window_bounds = array<i64: 1, 1, 32>}, {transform_indices = @transform_12, window_bounds = array<i64: 1, 1, 32>}, {transform_indices = @transform_13, window_bounds = array<i64: 2, 8, 32>}, {transform_indices = @transform_14, window_bounds = array<i64: 2, 4, 8, 8>}]} {
    %c0_i32 = arith.constant 0 : i32
    %0 = arith.cmpi eq, %arg1, %c0_i32 : i32
    %1 = arith.extui %0 : i1 to i32
    %c0_i32_0 = arith.constant 0 : i32
    %2 = arith.cmpi ne, %1, %c0_i32_0 : i32
    scf.if %2 {
      %c0_71 = arith.constant 0 : index
      %c0_72 = arith.constant 0 : index
      %c0_73 = arith.constant 0 : index
      %160 = vector.load %arg2[%c0_71, %c0_72, %c0_73] : memref<2x8x32xf32, #tpu.memory_space<vmem>>, vector<2x8x32xf32>
      %c0_74 = arith.constant 0 : index
      %c0_75 = arith.constant 0 : index
      %c0_76 = arith.constant 0 : index
      %161 = vector.load %arg15[%c0_74, %c0_75, %c0_76] : memref<2x8x32xf32, #tpu.memory_space<vmem>>, vector<2x8x32xf32>
      tpu.vector_store %arg15[%c0_74, %c0_75, %c0_76], %160 {strides = array<i32>} : memref<2x8x32xf32, #tpu.memory_space<vmem>>, vector<2x8x32xf32>,
    } else {
    }
    %c0 = arith.constant 0 : index
    %c0_1 = arith.constant 0 : index
    %c0_2 = arith.constant 0 : index
    %3 = vector.load %arg15[%c0, %c0_1, %c0_2] : memref<2x8x32xf32, #tpu.memory_space<vmem>>, vector<2x8x32xf32>
    %4 = vector.shape_cast %3 : vector<2x8x32xf32> to vector<16x32xf32>
    %c0_3 = arith.constant 0 : index
    %c0_4 = arith.constant 0 : index
    %c0_5 = arith.constant 0 : index
    %5 = vector.load %arg11[%c0_3, %c0_4, %c0_5] : memref<1x1x32xf32, #tpu.memory_space<vmem>>, vector<1x1x32xf32>
    %6 = vector.shape_cast %5 : vector<1x1x32xf32> to vector<1x32xf32>
    %c0_6 = arith.constant 0 : index
    %c0_7 = arith.constant 0 : index
    %c0_8 = arith.constant 0 : index
    %7 = vector.load %arg12[%c0_6, %c0_7, %c0_8] : memref<1x1x32xf32, #tpu.memory_space<vmem>>, vector<1x1x32xf32>
    %8 = vector.shape_cast %7 : vector<1x1x32xf32> to vector<1x32xf32>
    %cst = arith.constant dense<0.000000e+00> : vector<16xf32>
    %9 = vector.multi_reduction <add>, %4, %cst [1] : vector<16x32xf32> to vector<16xf32>
    %10 = vector.shape_cast %9 : vector<16xf32> to vector<16x1xf32>
    %cst_9 = arith.constant 3.200000e+01 : f32
    %11 = vector.broadcast %cst_9 : f32 to vector<16x1xf32>
    %12 = arith.divf %10, %11 : vector<16x1xf32>
    %13 = vector.broadcast %12 : vector<16x1xf32> to vector<16x32xf32>
    %14 = arith.subf %4, %13 : vector<16x32xf32>
    %15 = arith.mulf %14, %14 : vector<16x32xf32>
    %cst_10 = arith.constant dense<0.000000e+00> : vector<16xf32>
    %16 = vector.multi_reduction <add>, %15, %cst_10 [1] : vector<16x32xf32> to vector<16xf32>
    %17 = vector.shape_cast %16 : vector<16xf32> to vector<16x1xf32>
    %cst_11 = arith.constant 3.200000e+01 : f32
    %18 = vector.broadcast %cst_11 : f32 to vector<16x1xf32>
    %19 = arith.divf %17, %18 : vector<16x1xf32>
    %20 = vector.broadcast %12 : vector<16x1xf32> to vector<16x32xf32>
    %21 = arith.subf %4, %20 : vector<16x32xf32>
    %cst_12 = arith.constant 9.99999974E-6 : f32
    %22 = vector.broadcast %cst_12 : f32 to vector<16x1xf32>
    %23 = arith.addf %19, %22 : vector<16x1xf32>
    %24 = math.rsqrt %23 : vector<16x1xf32>
    %25 = vector.broadcast %24 : vector<16x1xf32> to vector<16x32xf32>
    %26 = arith.mulf %21, %25 : vector<16x32xf32>
    %27 = vector.broadcast %6 : vector<1x32xf32> to vector<16x32xf32>
    %28 = arith.mulf %26, %27 : vector<16x32xf32>
    %29 = vector.broadcast %8 : vector<1x32xf32> to vector<16x32xf32>
    %30 = arith.addf %28, %29 : vector<16x32xf32>
    %31 = arith.truncf %30 : vector<16x32xf32> to vector<16x32xbf16>
    %c0_13 = arith.constant 0 : index
    %c0_14 = arith.constant 0 : index
    %c0_15 = arith.constant 0 : index
    %32 = vector.load %arg3[%c0_13, %c0_14, %c0_15] : memref<1x32x96xbf16, #tpu.memory_space<vmem>>, vector<1x32x96xbf16>
    %33 = vector.shape_cast %32 : vector<1x32x96xbf16> to vector<32x96xbf16>
    %cst_16 = arith.constant dense<0.000000e+00> : vector<16x96xf32>
    %34 = tpu.matmul %31, %33, %cst_16 {dimension_numbers = #tpu.dot_dimension_numbers<[1], [0], [0], [1], [0, 0, 1, 1], [], []>} : vector<16x32xbf16>, vector<32x96xbf16>, vector<16x96xf32> -> vector<16x96xf32>
    %c0_17 = arith.constant 0 : index
    %c0_18 = arith.constant 0 : index
    %c0_19 = arith.constant 0 : index
    %35 = vector.load %arg4[%c0_17, %c0_18, %c0_19] : memref<1x1x96xf32, #tpu.memory_space<vmem>>, vector<1x1x96xf32>
    %36 = vector.shape_cast %35 : vector<1x1x96xf32> to vector<1x96xf32>
    %37 = vector.broadcast %36 : vector<1x96xf32> to vector<16x96xf32>
    %38 = arith.addf %34, %37 : vector<16x96xf32>
    %39 = vector.extract_strided_slice %38 {offsets = [0, 0], sizes = [8, 96], strides = [1, 1]} : vector<16x96xf32> to vector<8x96xf32>
    %40 = vector.extract_strided_slice %39 {offsets = [0, 0], sizes = [8, 32], strides = [1, 1]} : vector<8x96xf32> to vector<8x32xf32>
    %41 = vector.shape_cast %40 : vector<8x32xf32> to vector<8x4x8xf32>
    %42 = tpu.transpose %41, [1, 0, 2] : vector<8x4x8xf32> -> vector<4x8x8xf32>
    %43 = arith.truncf %42 : vector<4x8x8xf32> to vector<4x8x8xbf16>
    %44 = vector.extract_strided_slice %39 {offsets = [0, 32], sizes = [8, 32], strides = [1, 1]} : vector<8x96xf32> to vector<8x32xf32>
    %45 = vector.shape_cast %44 : vector<8x32xf32> to vector<8x4x8xf32>
    %46 = tpu.transpose %45, [1, 0, 2] : vector<8x4x8xf32> -> vector<4x8x8xf32>
    %47 = arith.truncf %46 : vector<4x8x8xf32> to vector<4x8x8xbf16>
    %48 = vector.extract_strided_slice %39 {offsets = [0, 64], sizes = [8, 32], strides = [1, 1]} : vector<8x96xf32> to vector<8x32xf32>
    %49 = vector.shape_cast %48 : vector<8x32xf32> to vector<8x4x8xf32>
    %50 = tpu.transpose %49, [1, 0, 2] : vector<8x4x8xf32> -> vector<4x8x8xf32>
    %51 = arith.truncf %50 : vector<4x8x8xf32> to vector<4x8x8xbf16>
    "tpu.trace_start"() <{level = 10 : i32, message = "hqd,hkd->hqk"}> : () -> ()
    %cst_20 = arith.constant dense<0.000000e+00> : vector<4x8x8xf32>
    %52 = tpu.matmul %43, %47, %cst_20 {dimension_numbers = #tpu.dot_dimension_numbers<[2], [2], [1], [1], [0, 0, 0, 1, 1, 1], [0], [0]>} : vector<4x8x8xbf16>, vector<4x8x8xbf16>, vector<4x8x8xf32> -> vector<4x8x8xf32>
    "tpu.trace_stop"() : () -> ()
    %cst_21 = arith.constant dense<0xFF800000> : vector<4x8xf32>
    %53 = vector.multi_reduction <maximumf>, %52, %cst_21 [2] : vector<4x8x8xf32> to vector<4x8xf32>
    %54 = vector.shape_cast %53 : vector<4x8xf32> to vector<4x8x1xf32>
    %55 = vector.broadcast %54 : vector<4x8x1xf32> to vector<4x8x8xf32>
    %56 = arith.subf %52, %55 : vector<4x8x8xf32>
    %57 = math.exp %56 : vector<4x8x8xf32>
    %cst_22 = arith.constant dense<0.000000e+00> : vector<4x8xf32>
    %58 = vector.multi_reduction <add>, %57, %cst_22 [2] : vector<4x8x8xf32> to vector<4x8xf32>
    %59 = vector.shape_cast %58 : vector<4x8xf32> to vector<4x8x1xf32>
    %60 = tpu.reciprocal %59 : vector<4x8x1xf32> -> vector<4x8x1xf32>
    %61 = vector.broadcast %60 : vector<4x8x1xf32> to vector<4x8x8xf32>
    %62 = arith.mulf %57, %61 : vector<4x8x8xf32>
    %63 = arith.truncf %62 : vector<4x8x8xf32> to vector<4x8x8xbf16>
    %c0_23 = arith.constant 0 : index
    %c0_24 = arith.constant 0 : index
    %c0_25 = arith.constant 0 : index
    %c0_26 = arith.constant 0 : index
    %64 = vector.load %arg16[%c0_23, %c0_24, %c0_25, %c0_26] : memref<2x4x8x8xbf16, #tpu.memory_space<vmem>>, vector<1x4x8x8xbf16>
    %65 = vector.shape_cast %64 : vector<1x4x8x8xbf16> to vector<4x8x8xbf16>
    %66 = vector.shape_cast %63 : vector<4x8x8xbf16> to vector<1x4x8x8xbf16>
    tpu.vector_store %arg16[%c0_23, %c0_24, %c0_25, %c0_26], %66 {strides = array<i32>} : memref<2x4x8x8xbf16, #tpu.memory_space<vmem>>, vector<1x4x8x8xbf16>,
    %67 = arith.truncf %62 : vector<4x8x8xf32> to vector<4x8x8xbf16>
    "tpu.trace_start"() <{level = 10 : i32, message = "hqk,hkd->hqd"}> : () -> ()
    %cst_27 = arith.constant dense<0.000000e+00> : vector<4x8x8xf32>
    %68 = tpu.matmul %67, %51, %cst_27 {dimension_numbers = #tpu.dot_dimension_numbers<[2], [1], [1], [2], [0, 0, 0, 1, 1, 2], [0], [0]>} : vector<4x8x8xbf16>, vector<4x8x8xbf16>, vector<4x8x8xf32> -> vector<4x8x8xf32>
    "tpu.trace_stop"() : () -> ()
    %69 = tpu.transpose %68, [1, 0, 2] : vector<4x8x8xf32> -> vector<8x4x8xf32>
    %70 = vector.shape_cast %69 : vector<8x4x8xf32> to vector<8x32xf32>
    %71 = vector.extract_strided_slice %38 {offsets = [8, 0], sizes = [8, 96], strides = [1, 1]} : vector<16x96xf32> to vector<8x96xf32>
    %72 = vector.extract_strided_slice %71 {offsets = [0, 0], sizes = [8, 32], strides = [1, 1]} : vector<8x96xf32> to vector<8x32xf32>
    %73 = vector.shape_cast %72 : vector<8x32xf32> to vector<8x4x8xf32>
    %74 = tpu.transpose %73, [1, 0, 2] : vector<8x4x8xf32> -> vector<4x8x8xf32>
    %75 = arith.truncf %74 : vector<4x8x8xf32> to vector<4x8x8xbf16>
    %76 = vector.extract_strided_slice %71 {offsets = [0, 32], sizes = [8, 32], strides = [1, 1]} : vector<8x96xf32> to vector<8x32xf32>
    %77 = vector.shape_cast %76 : vector<8x32xf32> to vector<8x4x8xf32>
    %78 = tpu.transpose %77, [1, 0, 2] : vector<8x4x8xf32> -> vector<4x8x8xf32>
    %79 = arith.truncf %78 : vector<4x8x8xf32> to vector<4x8x8xbf16>
    %80 = vector.extract_strided_slice %71 {offsets = [0, 64], sizes = [8, 32], strides = [1, 1]} : vector<8x96xf32> to vector<8x32xf32>
    %81 = vector.shape_cast %80 : vector<8x32xf32> to vector<8x4x8xf32>
    %82 = tpu.transpose %81, [1, 0, 2] : vector<8x4x8xf32> -> vector<4x8x8xf32>
    %83 = arith.truncf %82 : vector<4x8x8xf32> to vector<4x8x8xbf16>
    "tpu.trace_start"() <{level = 10 : i32, message = "hqd,hkd->hqk"}> : () -> ()
    %cst_28 = arith.constant dense<0.000000e+00> : vector<4x8x8xf32>
    %84 = tpu.matmul %75, %79, %cst_28 {dimension_numbers = #tpu.dot_dimension_numbers<[2], [2], [1], [1], [0, 0, 0, 1, 1, 1], [0], [0]>} : vector<4x8x8xbf16>, vector<4x8x8xbf16>, vector<4x8x8xf32> -> vector<4x8x8xf32>
    "tpu.trace_stop"() : () -> ()
    %cst_29 = arith.constant dense<0xFF800000> : vector<4x8xf32>
    %85 = vector.multi_reduction <maximumf>, %84, %cst_29 [2] : vector<4x8x8xf32> to vector<4x8xf32>
    %86 = vector.shape_cast %85 : vector<4x8xf32> to vector<4x8x1xf32>
    %87 = vector.broadcast %86 : vector<4x8x1xf32> to vector<4x8x8xf32>
    %88 = arith.subf %84, %87 : vector<4x8x8xf32>
    %89 = math.exp %88 : vector<4x8x8xf32>
    %cst_30 = arith.constant dense<0.000000e+00> : vector<4x8xf32>
    %90 = vector.multi_reduction <add>, %89, %cst_30 [2] : vector<4x8x8xf32> to vector<4x8xf32>
    %91 = vector.shape_cast %90 : vector<4x8xf32> to vector<4x8x1xf32>
    %92 = tpu.reciprocal %91 : vector<4x8x1xf32> -> vector<4x8x1xf32>
    %93 = vector.broadcast %92 : vector<4x8x1xf32> to vector<4x8x8xf32>
    %94 = arith.mulf %89, %93 : vector<4x8x8xf32>
    %95 = arith.truncf %94 : vector<4x8x8xf32> to vector<4x8x8xbf16>
    %c1 = arith.constant 1 : index
    %c0_31 = arith.constant 0 : index
    %c0_32 = arith.constant 0 : index
    %c0_33 = arith.constant 0 : index
    %96 = vector.load %arg16[%c1, %c0_31, %c0_32, %c0_33] : memref<2x4x8x8xbf16, #tpu.memory_space<vmem>>, vector<1x4x8x8xbf16>
    %97 = vector.shape_cast %96 : vector<1x4x8x8xbf16> to vector<4x8x8xbf16>
    %98 = vector.shape_cast %95 : vector<4x8x8xbf16> to vector<1x4x8x8xbf16>
    tpu.vector_store %arg16[%c1, %c0_31, %c0_32, %c0_33], %98 {strides = array<i32>} : memref<2x4x8x8xbf16, #tpu.memory_space<vmem>>, vector<1x4x8x8xbf16>,
    %99 = arith.truncf %94 : vector<4x8x8xf32> to vector<4x8x8xbf16>
    "tpu.trace_start"() <{level = 10 : i32, message = "hqk,hkd->hqd"}> : () -> ()
    %cst_34 = arith.constant dense<0.000000e+00> : vector<4x8x8xf32>
    %100 = tpu.matmul %99, %83, %cst_34 {dimension_numbers = #tpu.dot_dimension_numbers<[2], [1], [1], [2], [0, 0, 0, 1, 1, 2], [0], [0]>} : vector<4x8x8xbf16>, vector<4x8x8xbf16>, vector<4x8x8xf32> -> vector<4x8x8xf32>
    "tpu.trace_stop"() : () -> ()
    %101 = tpu.transpose %100, [1, 0, 2] : vector<4x8x8xf32> -> vector<8x4x8xf32>
    %102 = vector.shape_cast %101 : vector<8x4x8xf32> to vector<8x32xf32>
    %103 = tpu.concatenate %70, %102 in 0 : vector<8x32xf32>, vector<8x32xf32> -> vector<16x32xf32>
    %104 = arith.truncf %103 : vector<16x32xf32> to vector<16x32xbf16>
    %c0_35 = arith.constant 0 : index
    %c0_36 = arith.constant 0 : index
    %c0_37 = arith.constant 0 : index
    %105 = vector.load %arg5[%c0_35, %c0_36, %c0_37] : memref<1x32x32xbf16, #tpu.memory_space<vmem>>, vector<1x32x32xbf16>
    %106 = vector.shape_cast %105 : vector<1x32x32xbf16> to vector<32x32xbf16>
    %cst_38 = arith.constant dense<0.000000e+00> : vector<16x32xf32>
    %107 = tpu.matmul %104, %106, %cst_38 {dimension_numbers = #tpu.dot_dimension_numbers<[1], [0], [0], [1], [0, 0, 1, 1], [], []>} : vector<16x32xbf16>, vector<32x32xbf16>, vector<16x32xf32> -> vector<16x32xf32>
    %c0_39 = arith.constant 0 : index
    %c0_40 = arith.constant 0 : index
    %c0_41 = arith.constant 0 : index
    %108 = vector.load %arg6[%c0_39, %c0_40, %c0_41] : memref<1x1x32xf32, #tpu.memory_space<vmem>>, vector<1x1x32xf32>
    %109 = vector.shape_cast %108 : vector<1x1x32xf32> to vector<1x32xf32>
    %110 = vector.broadcast %109 : vector<1x32xf32> to vector<16x32xf32>
    %111 = arith.addf %107, %110 : vector<16x32xf32>
    %112 = arith.addf %30, %111 : vector<16x32xf32>
    %113 = arith.truncf %112 : vector<16x32xf32> to vector<16x32xbf16>
    %c0_42 = arith.constant 0 : index
    %c0_43 = arith.constant 0 : index
    %c0_44 = arith.constant 0 : index
    %114 = vector.load %arg7[%c0_42, %c0_43, %c0_44] : memref<1x32x64xbf16, #tpu.memory_space<vmem>>, vector<1x32x64xbf16>
    %115 = vector.shape_cast %114 : vector<1x32x64xbf16> to vector<32x64xbf16>
    %cst_45 = arith.constant dense<0.000000e+00> : vector<16x64xf32>
    %116 = tpu.matmul %113, %115, %cst_45 {dimension_numbers = #tpu.dot_dimension_numbers<[1], [0], [0], [1], [0, 0, 1, 1], [], []>} : vector<16x32xbf16>, vector<32x64xbf16>, vector<16x64xf32> -> vector<16x64xf32>
    %c0_46 = arith.constant 0 : index
    %c0_47 = arith.constant 0 : index
    %c0_48 = arith.constant 0 : index
    %117 = vector.load %arg8[%c0_46, %c0_47, %c0_48] : memref<1x1x64xf32, #tpu.memory_space<vmem>>, vector<1x1x64xf32>
    %118 = vector.shape_cast %117 : vector<1x1x64xf32> to vector<1x64xf32>
    %119 = vector.broadcast %118 : vector<1x64xf32> to vector<16x64xf32>
    %120 = arith.addf %116, %119 : vector<16x64xf32>
    %cst_49 = arith.constant 0.000000e+00 : f32
    %121 = vector.broadcast %cst_49 : f32 to vector<16x64xf32>
    %122 = arith.maximumf %120, %121 : vector<16x64xf32>
    %123 = arith.truncf %122 : vector<16x64xf32> to vector<16x64xbf16>
    %c0_50 = arith.constant 0 : index
    %c0_51 = arith.constant 0 : index
    %c0_52 = arith.constant 0 : index
    %124 = vector.load %arg9[%c0_50, %c0_51, %c0_52] : memref<1x64x32xbf16, #tpu.memory_space<vmem>>, vector<1x64x32xbf16>
    %125 = vector.shape_cast %124 : vector<1x64x32xbf16> to vector<64x32xbf16>
    %cst_53 = arith.constant dense<0.000000e+00> : vector<16x32xf32>
    %126 = tpu.matmul %123, %125, %cst_53 {dimension_numbers = #tpu.dot_dimension_numbers<[1], [0], [0], [1], [0, 0, 1, 1], [], []>} : vector<16x64xbf16>, vector<64x32xbf16>, vector<16x32xf32> -> vector<16x32xf32>
    %c0_54 = arith.constant 0 : index
    %c0_55 = arith.constant 0 : index
    %c0_56 = arith.constant 0 : index
    %127 = vector.load %arg10[%c0_54, %c0_55, %c0_56] : memref<1x1x32xf32, #tpu.memory_space<vmem>>, vector<1x1x32xf32>
    %128 = vector.shape_cast %127 : vector<1x1x32xf32> to vector<1x32xf32>
    %129 = vector.broadcast %128 : vector<1x32xf32> to vector<16x32xf32>
    %130 = arith.addf %126, %129 : vector<16x32xf32>
    %131 = arith.addf %112, %130 : vector<16x32xf32>
    %c0_57 = arith.constant 0 : index
    %c0_58 = arith.constant 0 : index
    %c0_59 = arith.constant 0 : index
    %132 = vector.load %arg13[%c0_57, %c0_58, %c0_59] : memref<1x1x32xf32, #tpu.memory_space<vmem>>, vector<1x1x32xf32>
    %133 = vector.shape_cast %132 : vector<1x1x32xf32> to vector<1x32xf32>
    %c0_60 = arith.constant 0 : index
    %c0_61 = arith.constant 0 : index
    %c0_62 = arith.constant 0 : index
    %134 = vector.load %arg14[%c0_60, %c0_61, %c0_62] : memref<1x1x32xf32, #tpu.memory_space<vmem>>, vector<1x1x32xf32>
    %135 = vector.shape_cast %134 : vector<1x1x32xf32> to vector<1x32xf32>
    %cst_63 = arith.constant dense<0.000000e+00> : vector<16xf32>
    %136 = vector.multi_reduction <add>, %131, %cst_63 [1] : vector<16x32xf32> to vector<16xf32>
    %137 = vector.shape_cast %136 : vector<16xf32> to vector<16x1xf32>
    %cst_64 = arith.constant 3.200000e+01 : f32
    %138 = vector.broadcast %cst_64 : f32 to vector<16x1xf32>
    %139 = arith.divf %137, %138 : vector<16x1xf32>
    %140 = vector.broadcast %139 : vector<16x1xf32> to vector<16x32xf32>
    %141 = arith.subf %131, %140 : vector<16x32xf32>
    %142 = arith.mulf %141, %141 : vector<16x32xf32>
    %cst_65 = arith.constant dense<0.000000e+00> : vector<16xf32>
    %143 = vector.multi_reduction <add>, %142, %cst_65 [1] : vector<16x32xf32> to vector<16xf32>
    %144 = vector.shape_cast %143 : vector<16xf32> to vector<16x1xf32>
    %cst_66 = arith.constant 3.200000e+01 : f32
    %145 = vector.broadcast %cst_66 : f32 to vector<16x1xf32>
    %146 = arith.divf %144, %145 : vector<16x1xf32>
    %147 = vector.broadcast %139 : vector<16x1xf32> to vector<16x32xf32>
    %148 = arith.subf %131, %147 : vector<16x32xf32>
    %cst_67 = arith.constant 9.99999974E-6 : f32
    %149 = vector.broadcast %cst_67 : f32 to vector<16x1xf32>
    %150 = arith.addf %146, %149 : vector<16x1xf32>
    %151 = math.rsqrt %150 : vector<16x1xf32>
    %152 = vector.broadcast %151 : vector<16x1xf32> to vector<16x32xf32>
    %153 = arith.mulf %148, %152 : vector<16x32xf32>
    %154 = vector.broadcast %133 : vector<1x32xf32> to vector<16x32xf32>
    %155 = arith.mulf %153, %154 : vector<16x32xf32>
    %156 = vector.broadcast %135 : vector<1x32xf32> to vector<16x32xf32>
    %157 = arith.addf %155, %156 : vector<16x32xf32>
    %158 = vector.shape_cast %157 : vector<16x32xf32> to vector<2x8x32xf32>
    %c0_68 = arith.constant 0 : index
    %c0_69 = arith.constant 0 : index
    %c0_70 = arith.constant 0 : index
    %159 = vector.load %arg15[%c0_68, %c0_69, %c0_70] : memref<2x8x32xf32, #tpu.memory_space<vmem>>, vector<2x8x32xf32>
    tpu.vector_store %arg15[%c0_68, %c0_69, %c0_70], %158 {strides = array<i32>} : memref<2x8x32xf32, #tpu.memory_space<vmem>>, vector<2x8x32xf32>,
    return
  }
  func.func @transform_0(%arg0: i32, %arg1: i32) -> (i32, i32, i32) {
    %c0_i32 = arith.constant 0 : i32
    %c0_i32_0 = arith.constant 0 : i32
    %c0_i32_1 = arith.constant 0 : i32
    return %arg0, %c0_i32, %c0_i32_0 : i32, i32, i32
  }
  func.func @transform_1(%arg0: i32, %arg1: i32) -> (i32, i32, i32) {
    %c0_i32 = arith.constant 0 : i32
    %c0_i32_0 = arith.constant 0 : i32
    %c0_i32_1 = arith.constant 0 : i32
    return %arg1, %c0_i32, %c0_i32_0 : i32, i32, i32
  }
  func.func @transform_2(%arg0: i32, %arg1: i32) -> (i32, i32, i32) {
    %c0_i32 = arith.constant 0 : i32
    %c0_i32_0 = arith.constant 0 : i32
    %c0_i32_1 = arith.constant 0 : i32
    return %arg1, %c0_i32, %c0_i32_0 : i32, i32, i32
  }
  func.func @transform_3(%arg0: i32, %arg1: i32) -> (i32, i32, i32) {
    %c0_i32 = arith.constant 0 : i32
    %c0_i32_0 = arith.constant 0 : i32
    %c0_i32_1 = arith.constant 0 : i32
    return %arg1, %c0_i32, %c0_i32_0 : i32, i32, i32
  }
  func.func @transform_4(%arg0: i32, %arg1: i32) -> (i32, i32, i32) {
    %c0_i32 = arith.constant 0 : i32
    %c0_i32_0 = arith.constant 0 : i32
    %c0_i32_1 = arith.constant 0 : i32
    return %arg1, %c0_i32, %c0_i32_0 : i32, i32, i32
  }
  func.func @transform_5(%arg0: i32, %arg1: i32) -> (i32, i32, i32) {
    %c0_i32 = arith.constant 0 : i32
    %c0_i32_0 = arith.constant 0 : i32
    %c0_i32_1 = arith.constant 0 : i32
    return %arg1, %c0_i32, %c0_i32_0 : i32, i32, i32
  }
  func.func @transform_6(%arg0: i32, %arg1: i32) -> (i32, i32, i32) {
    %c0_i32 = arith.constant 0 : i32
    %c0_i32_0 = arith.constant 0 : i32
    %c0_i32_1 = arith.constant 0 : i32
    return %arg1, %c0_i32, %c0_i32_0 : i32, i32, i32
  }
  func.func @transform_7(%arg0: i32, %arg1: i32) -> (i32, i32, i32) {
    %c0_i32 = arith.constant 0 : i32
    %c0_i32_0 = arith.constant 0 : i32
    %c0_i32_1 = arith.constant 0 : i32
    return %arg1, %c0_i32, %c0_i32_0 : i32, i32, i32
  }
  func.func @transform_8(%arg0: i32, %arg1: i32) -> (i32, i32, i32) {
    %c0_i32 = arith.constant 0 : i32
    %c0_i32_0 = arith.constant 0 : i32
    %c0_i32_1 = arith.constant 0 : i32
    return %arg1, %c0_i32, %c0_i32_0 : i32, i32, i32
  }
  func.func @transform_9(%arg0: i32, %arg1: i32) -> (i32, i32, i32) {
    %c0_i32 = arith.constant 0 : i32
    %c0_i32_0 = arith.constant 0 : i32
    %c0_i32_1 = arith.constant 0 : i32
    return %arg1, %c0_i32, %c0_i32_0 : i32, i32, i32
  }
  func.func @transform_10(%arg0: i32, %arg1: i32) -> (i32, i32, i32) {
    %c0_i32 = arith.constant 0 : i32
    %c0_i32_0 = arith.constant 0 : i32
    %c0_i32_1 = arith.constant 0 : i32
    return %arg1, %c0_i32, %c0_i32_0 : i32, i32, i32
  }
  func.func @transform_11(%arg0: i32, %arg1: i32) -> (i32, i32, i32) {
    %c0_i32 = arith.constant 0 : i32
    %c0_i32_0 = arith.constant 0 : i32
    %c0_i32_1 = arith.constant 0 : i32
    return %arg1, %c0_i32, %c0_i32_0 : i32, i32, i32
  }
  func.func @transform_12(%arg0: i32, %arg1: i32) -> (i32, i32, i32) {
    %c0_i32 = arith.constant 0 : i32
    %c0_i32_0 = arith.constant 0 : i32
    %c0_i32_1 = arith.constant 0 : i32
    return %arg1, %c0_i32, %c0_i32_0 : i32, i32, i32
  }
  func.func @transform_13(%arg0: i32, %arg1: i32) -> (i32, i32, i32) {
    %c0_i32 = arith.constant 0 : i32
    %c0_i32_0 = arith.constant 0 : i32
    %c0_i32_1 = arith.constant 0 : i32
    return %arg0, %c0_i32, %c0_i32_0 : i32, i32, i32
  }
  func.func @transform_14(%arg0: i32, %arg1: i32) -> (i32, i32, i32, i32) {
    %c2_i32 = arith.constant 2 : i32
    %0 = arith.muli %arg1, %c2_i32 : i32
    %1 = arith.addi %0, %arg0 : i32
    %c0_i32 = arith.constant 0 : i32
    %c0_i32_0 = arith.constant 0 : i32
    %c0_i32_1 = arith.constant 0 : i32
    %c0_i32_2 = arith.constant 0 : i32
    return %1, %c0_i32, %c0_i32_0, %c0_i32_1 : i32, i32, i32, i32
  }
}

</mosaic_0001>

<llo_original>
// kernel: tpu_custom_call.1
$region0: #{tpu_custom_call.1}
  #allocation0 [shape = 'u32[]', space=smem, size = 0x4, offset = 0x4, fixed_abs, tag = 'smem constant byte address 0x4 - core index']
  #allocation1 [shape = 'u32[72,128]{1,0:T(1,128)}', space=vmem, size = 0x9000, scoped, tag = 'internal scratch']
  %s0 = inlined_call_operand.vmem [shape: f32[4,8,32], index: 0, kind: input, shape index: {}]
  %s1 = inlined_call_operand.vmem [shape: bf16[2,32,96], index: 1, kind: input, shape index: {}]
  %s2 = inlined_call_operand.hbm [shape: f32[2,1,96], index: 2, kind: input, shape index: {}]
  %s3 = inlined_call_operand.vmem [shape: bf16[2,32,32], index: 3, kind: input, shape index: {}]
  %s4 = inlined_call_operand.vmem [shape: f32[2,1,32], index: 4, kind: input, shape index: {}]
  %s5 = inlined_call_operand.hbm [shape: bf16[2,32,64], index: 5, kind: input, shape index: {}]
  %s6 = inlined_call_operand.vmem [shape: f32[2,1,64], index: 6, kind: input, shape index: {}]
  %s7 = inlined_call_operand.vmem [shape: bf16[2,64,32], index: 7, kind: input, shape index: {}]
  %s8 = inlined_call_operand.vmem [shape: f32[2,1,32], index: 8, kind: input, shape index: {}]
  %s9 = inlined_call_operand.hbm [shape: f32[2,1,32], index: 9, kind: input, shape index: {}]
  %s10 = inlined_call_operand.vmem [shape: f32[2,1,32], index: 10, kind: input, shape index: {}]
  %s11 = inlined_call_operand.hbm [shape: f32[2,1,32], index: 11, kind: input, shape index: {}]
  %s12 = inlined_call_operand.vmem [shape: f32[2,1,32], index: 12, kind: input, shape index: {}]
  %s13 = inlined_call_operand.hbm [shape: f32[4,8,32], index: 13, kind: output, shape index: {0}]
  %s14 = inlined_call_operand.hbm [shape: bf16[8,4,8,8], index: 14, kind: output, shape index: {1}]
  %15 = xla_tuple %s13, %s14
  %s16 = sld [smem:[#allocation0]]
  $region113: #{tpu_custom_call.1} parent=0
    _
  %s18 = ssub.s32 1, %s16
  %s19 = scalar_select 0, %s18, %s16
  $region1: #{tpu_custom_call.1} parent=0
    #allocation2 [shape = 'u8[1024]{0}', space=vmem, size = 0x400, scoped, tag = 'input window, operand 2']
    #allocation3 [shape = 's32[2]{0}', space=sflag, size = 0x8, scoped, tag = 'scoped memory for tpu_custom_call.1']
    #allocation4 [shape = 's32[2]{0}', space=sflag, size = 0x8, scoped, tag = 'scoped memory for tpu_custom_call.1']
    #allocation5 [shape = 'u8[16384]{0}', space=vmem, size = 0x4000, scoped, tag = 'input window, operand 5']
    #allocation6 [shape = 's32[2]{0}', space=sflag, size = 0x8, scoped, tag = 'scoped memory for tpu_custom_call.1']
    #allocation7 [shape = 'u8[1024]{0}', space=vmem, size = 0x400, scoped, tag = 'input window, operand 9']
    #allocation8 [shape = 'u8[1024]{0}', space=vmem, size = 0x400, scoped, tag = 'input window, operand 11']
    #allocation9 [shape = 's32[2]{0}', space=sflag, size = 0x8, scoped, tag = 'scoped memory for tpu_custom_call.1']
    #allocation10 [shape = 'u8[16384]{0}', space=vmem, size = 0x4000, scoped, tag = 'output window, operand 0']
    #allocation11 [shape = 'u8[32768]{0}', space=vmem, size = 0x8000, scoped, tag = 'output window, operand 1']
    #allocation12 [shape = 's32[2]{0}', space=sflag, size = 0x8, scoped, tag = 'scoped memory for tpu_custom_call.1']
    %20 = vsyncpa [#allocation3], 0
    %s21 = scalar_lea.sflag [#allocation3], 1
    %22 = vsyncpa %s21, 0
    %23 = vsyncpa [#allocation6], 0
    %s24 = scalar_lea.sflag [#allocation6], 1
    %25 = vsyncpa %s24, 0
    %26 = vsyncpa [#allocation9], 0
    %s27 = scalar_lea.sflag [#allocation9], 1
    %28 = vsyncpa %s27, 0
    %29 = vsyncpa [#allocation4], 0
    %s30 = scalar_lea.sflag [#allocation4], 1
    %31 = vsyncpa %s30, 0
    %32 = vsyncpa [#allocation12], 0
    %s33 = scalar_lea.sflag [#allocation12], 1
    %34 = vsyncpa %s33, 0
    loop: start=0, step=1, limit=6
    $region2: #{tpu_custom_call.1} parent=1 // loop_pre_header
      _
    $region3: #{tpu_custom_call.1} parent=1 // loop_header
      %s36 = sphi 0, %s40
      %p37 = scmp.ge.s32.totalorder %s36, 6
      %s43 = sphi 0, %s55
      %s44 = sphi 0, %s51
      %s45 = sphi 0, %s43
      %s46 = sphi 0, %s44
      %s47 = sphi 0, %s45
      %s48 = sphi 0, %s46
      %s58 = sphi 0, %s60
      %s61 = sphi 0, %s58
      %s62 = sphi 0, %s61
      %s78 = sphi 0, %s62
      %s84 = sphi 0, %s86
      %s87 = sphi 0, %s84
      %s88 = sphi 0, %s87
      %s104 = sphi 0, %s88
      %s110 = sphi 0, %s112
      %s113 = sphi 0, %s110
      %s114 = sphi 0, %s113
      %s130 = sphi 0, %s114
      %s136 = sphi 0, %s138
      %s139 = sphi 0, %s136
      %s140 = sphi 0, %s139
      %s156 = sphi 0, %s140
      %s162 = sphi 0, %s164
      %s165 = sphi 0, %s162
      %s166 = sphi 0, %s165
      %s182 = sphi 0, %s166
      %s188 = sphi 0, %s190
      %s191 = sphi 0, %s188
      %s192 = sphi 0, %s191
      %s208 = sphi 0, %s192
      %s214 = sphi 0, %s216
      %s217 = sphi 0, %s214
      %s218 = sphi 0, %s217
      %s234 = sphi 0, %s218
      %s240 = sphi 0, %s242
      %s243 = sphi 0, %s240
      %s244 = sphi 0, %s243
      %s260 = sphi 0, %s244
      %s266 = sphi 0, %s268
      %s269 = sphi 0, %s266
      %s270 = sphi 0, %s269
      %s286 = sphi 0, %s270
      %s292 = sphi 0, %s294
      %s295 = sphi 0, %s292
      %s296 = sphi 0, %s295
      %s312 = sphi 0, %s296
      %s318 = sphi 0, %s320
      %s321 = sphi 0, %s318
      %s322 = sphi 0, %s321
      %s338 = sphi 0, %s322
      %s344 = sphi 0, %s346
      %s347 = sphi 0, %s344
      %s348 = sphi 0, %s347
      %s364 = sphi 0, %s348
      %s370 = sphi 0, %s372
      %s373 = sphi 0, %s370
      %s374 = sphi 0, %s373
      %s390 = sphi 0, %s374
      %s396 = sphi 0, %s398
      %s399 = sphi 0, %s396
      %s400 = sphi 0, %s399
      %s416 = sphi 0, %s400
      %s426 = sphi 0, %s428
      %s429 = sphi 0, %s426
      %s430 = sphi 0, %s429
      %s446 = sphi 0, %s430
    $region4: #{tpu_custom_call.1} parent=1 // loop_header_branch
      %39 = sbr.rel (%p37) target = $region8
    $region5: #{tpu_custom_call.1} parent=1 // loop_body
      %s41 = ssub.s32 %s36, 1
      %s42 = ssub.s32 %s36, 2
      %s49 = sadd.s32 1, %s44
      %p50 = scmp.ge.s32.totalorder %s49, 2
      %s51 = scalar_select %p50, 0, %s49
      %s52 = sadd.s32 1, %s43
      %s53 = scalar_select %p50, %s52, %s43
      %p54 = scmp.ge.s32.totalorder %s53, 2
      %s55 = scalar_select %p54, 0, %s53
      %s56 = ssub.s32 %s43, %s55
      %p57 = scmp.eq.s32.totalorder %s56, 0
      %s59 = sadd.s32 %s58, 1
      %s60 = scalar_select %p57, %s58, %s59
      %p63 = pneg %p57
      %p64 = scmp.eq.s32.totalorder %s36, 3
      %p65 = por %p63, %p64
      %p66 = scmp.ne.s32.totalorder %s58, %s61
      %p67 = scmp.eq.s32.totalorder %s36, 0
      %p68 = por %p66, %p67
      %p69 = scmp.ne.s32.totalorder %s58, %s61
      %p70 = scmp.eq.s32.totalorder %s41, 3
      %p71 = por %p69, %p70
      %p72 = scmp.ne.s32.totalorder %s61, %s62
      %p73 = scmp.eq.s32.totalorder %s41, 0
      %p74 = por %p72, %p73
      %p75 = scmp.ne.s32.totalorder %s61, %s62
      %p76 = scmp.eq.s32.totalorder %s42, 3
      %p77 = por %p75, %p76
      %p79 = scmp.ne.s32.totalorder %s62, %s78
      %p80 = scmp.eq.s32.totalorder %s42, 0
      %p81 = por %p79, %p80
      %s82 = ssub.s32 %s44, %s51
      %p83 = scmp.eq.s32.totalorder %s82, 0
      %s85 = sadd.s32 %s84, 1
      %s86 = scalar_select %p83, %s84, %s85
      %p89 = pneg %p83
      %p90 = scmp.eq.s32.totalorder %s36, 3
      %p91 = por %p89, %p90
      %p92 = scmp.ne.s32.totalorder %s84, %s87
      %p93 = scmp.eq.s32.totalorder %s36, 0
      %p94 = por %p92, %p93
      %p95 = scmp.ne.s32.totalorder %s84, %s87
      %p96 = scmp.eq.s32.totalorder %s41, 3
      %p97 = por %p95, %p96
      %p98 = scmp.ne.s32.totalorder %s87, %s88
      %p99 = scmp.eq.s32.totalorder %s41, 0
      %p100 = por %p98, %p99
      %p101 = scmp.ne.s32.totalorder %s87, %s88
      %p102 = scmp.eq.s32.totalorder %s42, 3
      %p103 = por %p101, %p102
      %p105 = scmp.ne.s32.totalorder %s88, %s104
      %p106 = scmp.eq.s32.totalorder %s42, 0
      %p107 = por %p105, %p106
      %s108 = ssub.s32 %s44, %s51
      %p109 = scmp.eq.s32.totalorder %s108, 0
      %s111 = sadd.s32 %s110, 1
      %s112 = scalar_select %p109, %s110, %s111
      %p115 = pneg %p109
      %p116 = scmp.eq.s32.totalorder %s36, 3
      %p117 = por %p115, %p116
      %p118 = scmp.ne.s32.totalorder %s110, %s113
      %p119 = scmp.eq.s32.totalorder %s36, 0
      %p120 = por %p118, %p119
      %p121 = scmp.ne.s32.totalorder %s110, %s113
      %p122 = scmp.eq.s32.totalorder %s41, 3
      %p123 = por %p121, %p122
      %p124 = scmp.ne.s32.totalorder %s113, %s114
      %p125 = scmp.eq.s32.totalorder %s41, 0
      %p126 = por %p124, %p125
      %p127 = scmp.ne.s32.totalorder %s113, %s114
      %p128 = scmp.eq.s32.totalorder %s42, 3
      %p129 = por %p127, %p128
      %p131 = scmp.ne.s32.totalorder %s114, %s130
      %p132 = scmp.eq.s32.totalorder %s42, 0
      %p133 = por %p131, %p132
      %s134 = ssub.s32 %s44, %s51
      %p135 = scmp.eq.s32.totalorder %s134, 0
      %s137 = sadd.s32 %s136, 1
      %s138 = scalar_select %p135, %s136, %s137
      %p141 = pneg %p135
      %p142 = scmp.eq.s32.totalorder %s36, 3
      %p143 = por %p141, %p142
      %p144 = scmp.ne.s32.totalorder %s136, %s139
      %p145 = scmp.eq.s32.totalorder %s36, 0
      %p146 = por %p144, %p145
      %p147 = scmp.ne.s32.totalorder %s136, %s139
      %p148 = scmp.eq.s32.totalorder %s41, 3
      %p149 = por %p147, %p148
      %p150 = scmp.ne.s32.totalorder %s139, %s140
      %p151 = scmp.eq.s32.totalorder %s41, 0
      %p152 = por %p150, %p151
      %p153 = scmp.ne.s32.totalorder %s139, %s140
      %p154 = scmp.eq.s32.totalorder %s42, 3
      %p155 = por %p153, %p154
      %p157 = scmp.ne.s32.totalorder %s140, %s156
      %p158 = scmp.eq.s32.totalorder %s42, 0
      %p159 = por %p157, %p158
      %s160 = ssub.s32 %s44, %s51
      %p161 = scmp.eq.s32.totalorder %s160, 0
      %s163 = sadd.s32 %s162, 1
      %s164 = scalar_select %p161, %s162, %s163
      %p167 = pneg %p161
      %p168 = scmp.eq.s32.totalorder %s36, 3
      %p169 = por %p167, %p168
      %p170 = scmp.ne.s32.totalorder %s162, %s165
      %p171 = scmp.eq.s32.totalorder %s36, 0
      %p172 = por %p170, %p171
      %p173 = scmp.ne.s32.totalorder %s162, %s165
      %p174 = scmp.eq.s32.totalorder %s41, 3
      %p175 = por %p173, %p174
      %p176 = scmp.ne.s32.totalorder %s165, %s166
      %p177 = scmp.eq.s32.totalorder %s41, 0
      %p178 = por %p176, %p177
      %p179 = scmp.ne.s32.totalorder %s165, %s166
      %p180 = scmp.eq.s32.totalorder %s42, 3
      %p181 = por %p179, %p180
      %p183 = scmp.ne.s32.totalorder %s166, %s182
      %p184 = scmp.eq.s32.totalorder %s42, 0
      %p185 = por %p183, %p184
      %s186 = ssub.s32 %s44, %s51
      %p187 = scmp.eq.s32.totalorder %s186, 0
      %s189 = sadd.s32 %s188, 1
      %s190 = scalar_select %p187, %s188, %s189
      %p193 = pneg %p187
      %p194 = scmp.eq.s32.totalorder %s36, 3
      %p195 = por %p193, %p194
      %p196 = scmp.ne.s32.totalorder %s188, %s191
      %p197 = scmp.eq.s32.totalorder %s36, 0
      %p198 = por %p196, %p197
      %p199 = scmp.ne.s32.totalorder %s188, %s191
      %p200 = scmp.eq.s32.totalorder %s41, 3
      %p201 = por %p199, %p200
      %p202 = scmp.ne.s32.totalorder %s191, %s192
      %p203 = scmp.eq.s32.totalorder %s41, 0
      %p204 = por %p202, %p203
      %p205 = scmp.ne.s32.totalorder %s191, %s192
      %p206 = scmp.eq.s32.totalorder %s42, 3
      %p207 = por %p205, %p206
      %p209 = scmp.ne.s32.totalorder %s192, %s208
      %p210 = scmp.eq.s32.totalorder %s42, 0
      %p211 = por %p209, %p210
      %s212 = ssub.s32 %s44, %s51
      %p213 = scmp.eq.s32.totalorder %s212, 0
      %s215 = sadd.s32 %s214, 1
      %s216 = scalar_select %p213, %s214, %s215
      %p219 = pneg %p213
      %p220 = scmp.eq.s32.totalorder %s36, 3
      %p221 = por %p219, %p220
      %p222 = scmp.ne.s32.totalorder %s214, %s217
      %p223 = scmp.eq.s32.totalorder %s36, 0
      %p224 = por %p222, %p223
      %p225 = scmp.ne.s32.totalorder %s214, %s217
      %p226 = scmp.eq.s32.totalorder %s41, 3
      %p227 = por %p225, %p226
      %p228 = scmp.ne.s32.totalorder %s217, %s218
      %p229 = scmp.eq.s32.totalorder %s41, 0
      %p230 = por %p228, %p229
      %p231 = scmp.ne.s32.totalorder %s217, %s218
      %p232 = scmp.eq.s32.totalorder %s42, 3
      %p233 = por %p231, %p232
      %p235 = scmp.ne.s32.totalorder %s218, %s234
      %p236 = scmp.eq.s32.totalorder %s42, 0
      %p237 = por %p235, %p236
      %s238 = ssub.s32 %s44, %s51
      %p239 = scmp.eq.s32.totalorder %s238, 0
      %s241 = sadd.s32 %s240, 1
      %s242 = scalar_select %p239, %s240, %s241
      %p245 = pneg %p239
      %p246 = scmp.eq.s32.totalorder %s36, 3
      %p247 = por %p245, %p246
      %p248 = scmp.ne.s32.totalorder %s240, %s243
      %p249 = scmp.eq.s32.totalorder %s36, 0
      %p250 = por %p248, %p249
      %p251 = scmp.ne.s32.totalorder %s240, %s243
      %p252 = scmp.eq.s32.totalorder %s41, 3
      %p253 = por %p251, %p252
      %p254 = scmp.ne.s32.totalorder %s243, %s244
      %p255 = scmp.eq.s32.totalorder %s41, 0
      %p256 = por %p254, %p255
      %p257 = scmp.ne.s32.totalorder %s243, %s244
      %p258 = scmp.eq.s32.totalorder %s42, 3
      %p259 = por %p257, %p258
      %p261 = scmp.ne.s32.totalorder %s244, %s260
      %p262 = scmp.eq.s32.totalorder %s42, 0
      %p263 = por %p261, %p262
      %s264 = ssub.s32 %s44, %s51
      %p265 = scmp.eq.s32.totalorder %s264, 0
      %s267 = sadd.s32 %s266, 1
      %s268 = scalar_select %p265, %s266, %s267
      %p271 = pneg %p265
      %p272 = scmp.eq.s32.totalorder %s36, 3
      %p273 = por %p271, %p272
      %p274 = scmp.ne.s32.totalorder %s266, %s269
      %p275 = scmp.eq.s32.totalorder %s36, 0
      %p276 = por %p274, %p275
      %p277 = scmp.ne.s32.totalorder %s266, %s269
      %p278 = scmp.eq.s32.totalorder %s41, 3
      %p279 = por %p277, %p278
      %p280 = scmp.ne.s32.totalorder %s269, %s270
      %p281 = scmp.eq.s32.totalorder %s41, 0
      %p282 = por %p280, %p281
      %p283 = scmp.ne.s32.totalorder %s269, %s270
      %p284 = scmp.eq.s32.totalorder %s42, 3
      %p285 = por %p283, %p284
      %p287 = scmp.ne.s32.totalorder %s270, %s286
      %p288 = scmp.eq.s32.totalorder %s42, 0
      %p289 = por %p287, %p288
      %s290 = ssub.s32 %s44, %s51
      %p291 = scmp.eq.s32.totalorder %s290, 0
      %s293 = sadd.s32 %s292, 1
      %s294 = scalar_select %p291, %s292, %s293
      %p297 = pneg %p291
      %p298 = scmp.eq.s32.totalorder %s36, 3
      %p299 = por %p297, %p298
      %p300 = scmp.ne.s32.totalorder %s292, %s295
      %p301 = scmp.eq.s32.totalorder %s36, 0
      %p302 = por %p300, %p301
      %p303 = scmp.ne.s32.totalorder %s292, %s295
      %p304 = scmp.eq.s32.totalorder %s41, 3
      %p305 = por %p303, %p304
      %p306 = scmp.ne.s32.totalorder %s295, %s296
      %p307 = scmp.eq.s32.totalorder %s41, 0
      %p308 = por %p306, %p307
      %p309 = scmp.ne.s32.totalorder %s295, %s296
      %p310 = scmp.eq.s32.totalorder %s42, 3
      %p311 = por %p309, %p310
      %p313 = scmp.ne.s32.totalorder %s296, %s312
      %p314 = scmp.eq.s32.totalorder %s42, 0
      %p315 = por %p313, %p314
      %s316 = ssub.s32 %s44, %s51
      %p317 = scmp.eq.s32.totalorder %s316, 0
      %s319 = sadd.s32 %s318, 1
      %s320 = scalar_select %p317, %s318, %s319
      %p323 = pneg %p317
      %p324 = scmp.eq.s32.totalorder %s36, 3
      %p325 = por %p323, %p324
      %p326 = scmp.ne.s32.totalorder %s318, %s321
      %p327 = scmp.eq.s32.totalorder %s36, 0
      %p328 = por %p326, %p327
      %p329 = scmp.ne.s32.totalorder %s318, %s321
      %p330 = scmp.eq.s32.totalorder %s41, 3
      %p331 = por %p329, %p330
      %p332 = scmp.ne.s32.totalorder %s321, %s322
      %p333 = scmp.eq.s32.totalorder %s41, 0
      %p334 = por %p332, %p333
      %p335 = scmp.ne.s32.totalorder %s321, %s322
      %p336 = scmp.eq.s32.totalorder %s42, 3
      %p337 = por %p335, %p336
      %p339 = scmp.ne.s32.totalorder %s322, %s338
      %p340 = scmp.eq.s32.totalorder %s42, 0
      %p341 = por %p339, %p340
      %s342 = ssub.s32 %s44, %s51
      %p343 = scmp.eq.s32.totalorder %s342, 0
      %s345 = sadd.s32 %s344, 1
      %s346 = scalar_select %p343, %s344, %s345
      %p349 = pneg %p343
      %p350 = scmp.eq.s32.totalorder %s36, 3
      %p351 = por %p349, %p350
      %p352 = scmp.ne.s32.totalorder %s344, %s347
      %p353 = scmp.eq.s32.totalorder %s36, 0
      %p354 = por %p352, %p353
      %p355 = scmp.ne.s32.totalorder %s344, %s347
      %p356 = scmp.eq.s32.totalorder %s41, 3
      %p357 = por %p355, %p356
      %p358 = scmp.ne.s32.totalorder %s347, %s348
      %p359 = scmp.eq.s32.totalorder %s41, 0
      %p360 = por %p358, %p359
      %p361 = scmp.ne.s32.totalorder %s347, %s348
      %p362 = scmp.eq.s32.totalorder %s42, 3
      %p363 = por %p361, %p362
      %p365 = scmp.ne.s32.totalorder %s348, %s364
      %p366 = scmp.eq.s32.totalorder %s42, 0
      %p367 = por %p365, %p366
      %s368 = ssub.s32 %s44, %s51
      %p369 = scmp.eq.s32.totalorder %s368, 0
      %s371 = sadd.s32 %s370, 1
      %s372 = scalar_select %p369, %s370, %s371
      %p375 = pneg %p369
      %p376 = scmp.eq.s32.totalorder %s36, 3
      %p377 = por %p375, %p376
      %p378 = scmp.ne.s32.totalorder %s370, %s373
      %p379 = scmp.eq.s32.totalorder %s36, 0
      %p380 = por %p378, %p379
      %p381 = scmp.ne.s32.totalorder %s370, %s373
      %p382 = scmp.eq.s32.totalorder %s41, 3
      %p383 = por %p381, %p382
      %p384 = scmp.ne.s32.totalorder %s373, %s374
      %p385 = scmp.eq.s32.totalorder %s41, 0
      %p386 = por %p384, %p385
      %p387 = scmp.ne.s32.totalorder %s373, %s374
      %p388 = scmp.eq.s32.totalorder %s42, 3
      %p389 = por %p387, %p388
      %p391 = scmp.ne.s32.totalorder %s374, %s390
      %p392 = scmp.eq.s32.totalorder %s42, 0
      %p393 = por %p391, %p392
      %s394 = ssub.s32 %s43, %s55
      %p395 = scmp.eq.s32.totalorder %s394, 0
      %s397 = sadd.s32 %s396, 1
      %s398 = scalar_select %p395, %s396, %s397
      %p401 = pneg %p395
      %p402 = scmp.eq.s32.totalorder %s36, 3
      %p403 = por %p401, %p402
      %p404 = scmp.ne.s32.totalorder %s396, %s399
      %p405 = scmp.eq.s32.totalorder %s36, 0
      %p406 = por %p404, %p405
      %p407 = scmp.ne.s32.totalorder %s396, %s399
      %p408 = scmp.eq.s32.totalorder %s41, 3
      %p409 = por %p407, %p408
      %p410 = scmp.ne.s32.totalorder %s399, %s400
      %p411 = scmp.eq.s32.totalorder %s41, 0
      %p412 = por %p410, %p411
      %p413 = scmp.ne.s32.totalorder %s399, %s400
      %p414 = scmp.eq.s32.totalorder %s42, 3
      %p415 = por %p413, %p414
      %p417 = scmp.ne.s32.totalorder %s400, %s416
      %p418 = scmp.eq.s32.totalorder %s42, 0
      %p419 = por %p417, %p418
      %s420 = smul.u32 %s44, 2
      %s421 = sadd.s32 %s420, %s43
      %s422 = smul.u32 %s51, 2
      %s423 = sadd.s32 %s422, %s55
      %s424 = ssub.s32 %s421, %s423
      %p425 = scmp.eq.s32.totalorder %s424, 0
      %s427 = sadd.s32 %s426, 1
      %s428 = scalar_select %p425, %s426, %s427
      %p431 = pneg %p425
      %p432 = scmp.eq.s32.totalorder %s36, 3
      %p433 = por %p431, %p432
      %p434 = scmp.ne.s32.totalorder %s426, %s429
      %p435 = scmp.eq.s32.totalorder %s36, 0
      %p436 = por %p434, %p435
      %p437 = scmp.ne.s32.totalorder %s426, %s429
      %p438 = scmp.eq.s32.totalorder %s41, 3
      %p439 = por %p437, %p438
      %p440 = scmp.ne.s32.totalorder %s429, %s430
      %p441 = scmp.eq.s32.totalorder %s41, 0
      %p442 = por %p440, %p441
      %p443 = scmp.ne.s32.totalorder %s429, %s430
      %p444 = scmp.eq.s32.totalorder %s42, 3
      %p445 = por %p443, %p444
      %p447 = scmp.ne.s32.totalorder %s430, %s446
      %p448 = scmp.eq.s32.totalorder %s42, 0
      %p449 = por %p447, %p448
      %p450 = scmp.le.s32.totalorder 1, %s36
      %p451 = scmp.lt.s32.totalorder %s36, 5
      %p452 = pnand %p450, %p451
      %p453 = pneg %p452
      // Predicated region
      $region9: #{tpu_custom_call.1} parent=5 // pred_check
        _
      $region10: #{tpu_custom_call.1} parent=5 // pred_check_branch
        %455 = sbr.rel (%p452) target = $region12
      $region11: #{tpu_custom_call.1} parent=5 // pred_region
        %s456 = ssub.s32 %s36, 1
      $region12: #{tpu_custom_call.1} parent=5 // pred_fallthru
        _
      %p457 = scmp.lt.s32.totalorder %s36, 4
      // Predicated region
      $region13: #{tpu_custom_call.1} parent=5 // pred_check
        %p458 = pneg %p457
      $region14: #{tpu_custom_call.1} parent=5 // pred_check_branch
        %460 = sbr.rel (%p458) target = $region16
      $region15: #{tpu_custom_call.1} parent=5 // pred_region
        // Predicated region
        $region17: #{tpu_custom_call.1} parent=15 // pred_check
          %p461 = pneg %p68
        $region18: #{tpu_custom_call.1} parent=15 // pred_check_branch
          %463 = sbr.rel (%p461) target = $region20
        $region19: #{tpu_custom_call.1} parent=15 // pred_region
          %s464 = smul.u32 2, %s43
          %p465 = scmp.lt.s32.totalorder %s464, 3
          %s466 = scalar_select %p465, %s464, 3
          %s467 = smul.addr %s466, 8
          %s468 = scalar_lea.vmem %s0, %s467
          %s469 = smul.u32 2, %s43
        $region20: #{tpu_custom_call.1} parent=15 // pred_fallthru
          _
        // Predicated region
        $region21: #{tpu_custom_call.1} parent=15 // pred_check
          %p470 = pneg %p94
        $region22: #{tpu_custom_call.1} parent=15 // pred_check_branch
          %472 = sbr.rel (%p470) target = $region24
        $region23: #{tpu_custom_call.1} parent=15 // pred_region
          %p473 = scmp.lt.s32.totalorder %s44, 1
          %s474 = scalar_select %p473, %s44, 1
          %s475 = smul.addr %s474, 4
          %s476 = smul.addr %s475, 4
          %s477 = scalar_lea.vmem %s1, %s476
        $region24: #{tpu_custom_call.1} parent=15 // pred_fallthru
          _
        // Predicated region
        $region25: #{tpu_custom_call.1} parent=15 // pred_check
          %p478 = pneg %p120
        $region26: #{tpu_custom_call.1} parent=15 // pred_check_branch
          %480 = sbr.rel (%p478) target = $region28
        $region27: #{tpu_custom_call.1} parent=15 // pred_region
          %s481 = sand.u32 %s110, 1
          %s482 = scalar_lea.sflag [#allocation3], %s481
          %s483 = sand.u32 %s110, 1
          %s484 = scalar_lea.vmem [#allocation2], %s483
          %486 = vsyncadd %s482, 0
          %s487 = scalar_lea.hbm %s2, %s44
          %s489 = sshll.u32 %s487, 4
          %s490 = int_to_ptr.hbm [resolvable:$true] %s489
          %s491 = sshll.u32 %s484, 4
          %s492 = int_to_ptr.vmem [resolvable:$true] %s491
          %494 = dma.hbm_to_vmem [thread:$0]  %s490, 16, %s492, %s482
        $region28: #{tpu_custom_call.1} parent=15 // pred_fallthru
          _
        // Predicated region
        $region29: #{tpu_custom_call.1} parent=15 // pred_check
          %p495 = pneg %p146
        $region30: #{tpu_custom_call.1} parent=15 // pred_check_branch
          %497 = sbr.rel (%p495) target = $region32
        $region31: #{tpu_custom_call.1} parent=15 // pred_region
          %p498 = scmp.lt.s32.totalorder %s44, 1
          %s499 = scalar_select %p498, %s44, 1
          %s500 = smul.addr %s499, 4
          %s501 = smul.addr %s500, 4
          %s502 = scalar_lea.vmem %s3, %s501
        $region32: #{tpu_custom_call.1} parent=15 // pred_fallthru
          _
        // Predicated region
        $region33: #{tpu_custom_call.1} parent=15 // pred_check
          %p503 = pneg %p172
        $region34: #{tpu_custom_call.1} parent=15 // pred_check_branch
          %505 = sbr.rel (%p503) target = $region36
        $region35: #{tpu_custom_call.1} parent=15 // pred_region
          %p506 = scmp.lt.s32.totalorder %s44, 1
          %s507 = scalar_select %p506, %s44, 1
          %s508 = scalar_lea.vmem %s4, %s507
        $region36: #{tpu_custom_call.1} parent=15 // pred_fallthru
          _
        // Predicated region
        $region37: #{tpu_custom_call.1} parent=15 // pred_check
          %p509 = pneg %p198
        $region38: #{tpu_custom_call.1} parent=15 // pred_check_branch
          %511 = sbr.rel (%p509) target = $region40
        $region39: #{tpu_custom_call.1} parent=15 // pred_region
          %s512 = sand.u32 %s36, 1
          %s513 = scalar_lea.sflag [#allocation6], %s512
          %s514 = sand.u32 %s188, 1
          %s515 = smul.addr %s514, 16
          %s516 = scalar_lea.vmem [#allocation5], %s515
          %518 = vsyncadd %s513, 0
          %s519 = smul.addr %s44, 4
          %s520 = smul.addr %s519, 4
          %s521 = scalar_lea.hbm %s5, %s520
          %s522 = sshll.u32 %s521, 4
          %s523 = int_to_ptr.hbm [resolvable:$true] %s522
          %s524 = sshll.u32 %s516, 4
          %s525 = int_to_ptr.vmem [resolvable:$true] %s524
          %530 = dma.hbm_to_vmem [thread:$0]  %s523, 256, %s525, %s513, 64, 64, 4
        $region40: #{tpu_custom_call.1} parent=15 // pred_fallthru
          _
        // Predicated region
        $region41: #{tpu_custom_call.1} parent=15 // pred_check
          %p531 = pneg %p224
        $region42: #{tpu_custom_call.1} parent=15 // pred_check_branch
          %533 = sbr.rel (%p531) target = $region44
        $region43: #{tpu_custom_call.1} parent=15 // pred_region
          %p534 = scmp.lt.s32.totalorder %s44, 1
          %s535 = scalar_select %p534, %s44, 1
          %s536 = scalar_lea.vmem %s6, %s535
        $region44: #{tpu_custom_call.1} parent=15 // pred_fallthru
          _
        // Predicated region
        $region45: #{tpu_custom_call.1} parent=15 // pred_check
          %p537 = pneg %p250
        $region46: #{tpu_custom_call.1} parent=15 // pred_check_branch
          %539 = sbr.rel (%p537) target = $region48
        $region47: #{tpu_custom_call.1} parent=15 // pred_region
          %p540 = scmp.lt.s32.totalorder %s44, 1
          %s541 = scalar_select %p540, %s44, 1
          %s542 = smul.addr %s541, 8
          %s543 = smul.addr %s542, 4
          %s544 = scalar_lea.vmem %s7, %s543
        $region48: #{tpu_custom_call.1} parent=15 // pred_fallthru
          _
        // Predicated region
        $region49: #{tpu_custom_call.1} parent=15 // pred_check
          %p545 = pneg %p276
        $region50: #{tpu_custom_call.1} parent=15 // pred_check_branch
          %547 = sbr.rel (%p545) target = $region52
        $region51: #{tpu_custom_call.1} parent=15 // pred_region
          %p548 = scmp.lt.s32.totalorder %s44, 1
          %s549 = scalar_select %p548, %s44, 1
          %s550 = scalar_lea.vmem %s8, %s549
        $region52: #{tpu_custom_call.1} parent=15 // pred_fallthru
          _
        // Predicated region
        $region53: #{tpu_custom_call.1} parent=15 // pred_check
          %p551 = pneg %p302
        $region54: #{tpu_custom_call.1} parent=15 // pred_check_branch
          %553 = sbr.rel (%p551) target = $region56
        $region55: #{tpu_custom_call.1} parent=15 // pred_region
          %s554 = sand.u32 %s36, 1
          %s555 = scalar_lea.sflag [#allocation6], %s554
          %s556 = sand.u32 %s292, 1
          %s557 = scalar_lea.vmem [#allocation7], %s556
          %559 = vsyncadd %s555, 0
          %s560 = scalar_lea.hbm %s9, %s44
          %s562 = sshll.u32 %s560, 4
          %s563 = int_to_ptr.hbm [resolvable:$true] %s562
          %s564 = sshll.u32 %s557, 4
          %s565 = int_to_ptr.vmem [resolvable:$true] %s564
          %567 = dma.hbm_to_vmem [thread:$0]  %s563, 16, %s565, %s555
        $region56: #{tpu_custom_call.1} parent=15 // pred_fallthru
          _
        // Predicated region
        $region57: #{tpu_custom_call.1} parent=15 // pred_check
          %p568 = pneg %p328
        $region58: #{tpu_custom_call.1} parent=15 // pred_check_branch
          %570 = sbr.rel (%p568) target = $region60
        $region59: #{tpu_custom_call.1} parent=15 // pred_region
          %p571 = scmp.lt.s32.totalorder %s44, 1
          %s572 = scalar_select %p571, %s44, 1
          %s573 = scalar_lea.vmem %s10, %s572
        $region60: #{tpu_custom_call.1} parent=15 // pred_fallthru
          _
        // Predicated region
        $region61: #{tpu_custom_call.1} parent=15 // pred_check
          %p574 = pneg %p354
        $region62: #{tpu_custom_call.1} parent=15 // pred_check_branch
          %576 = sbr.rel (%p574) target = $region64
        $region63: #{tpu_custom_call.1} parent=15 // pred_region
          %s577 = sand.u32 %s344, 1
          %s578 = scalar_lea.sflag [#allocation9], %s577
          %s579 = sand.u32 %s344, 1
          %s580 = scalar_lea.vmem [#allocation8], %s579
          %582 = vsyncadd %s578, 0
          %s583 = scalar_lea.hbm %s11, %s44
          %s585 = sshll.u32 %s583, 4
          %s586 = int_to_ptr.hbm [resolvable:$true] %s585
          %s587 = sshll.u32 %s580, 4
          %s588 = int_to_ptr.vmem [resolvable:$true] %s587
          %590 = dma.hbm_to_vmem [thread:$0]  %s586, 16, %s588, %s578
        $region64: #{tpu_custom_call.1} parent=15 // pred_fallthru
          _
        // Predicated region
        $region65: #{tpu_custom_call.1} parent=15 // pred_check
          %p591 = pneg %p380
        $region66: #{tpu_custom_call.1} parent=15 // pred_check_branch
          %593 = sbr.rel (%p591) target = $region68
        $region67: #{tpu_custom_call.1} parent=15 // pred_region
          %p594 = scmp.lt.s32.totalorder %s44, 1
          %s595 = scalar_select %p594, %s44, 1
          %s596 = scalar_lea.vmem %s12, %s595
        $region68: #{tpu_custom_call.1} parent=15 // pred_fallthru
          _
      $region16: #{tpu_custom_call.1} parent=5 // pred_fallthru
        _
      %p597 = scmp.le.s32.totalorder 1, %s36
      %p598 = scmp.lt.s32.totalorder %s36, 5
      %p599 = pnand %p597, %p598
      %p600 = pneg %p599
      // Predicated region
      $region69: #{tpu_custom_call.1} parent=5 // pred_check
        _
      $region70: #{tpu_custom_call.1} parent=5 // pred_check_branch
        %602 = sbr.rel (%p599) target = $region72
      $region71: #{tpu_custom_call.1} parent=5 // pred_region
        %s603 = ssub.s32 %s36, 1
        %s604 = sand.u32 %s113, 1
        %s605 = scalar_lea.sflag [#allocation3], %s604
        %s606 = sand.u32 %s113, 1
        %s607 = scalar_lea.vmem [#allocation2], %s606
        // Predicated region
        $region73: #{tpu_custom_call.1} parent=71 // pred_check
          %p608 = pneg %p126
        $region74: #{tpu_custom_call.1} parent=71 // pred_check_branch
          %610 = sbr.rel (%p608) target = $region76
        $region75: #{tpu_custom_call.1} parent=71 // pred_region
          %612 = dma.done %s605, 16
        $region76: #{tpu_custom_call.1} parent=71 // pred_fallthru
          _
        %s613 = sand.u32 %s41, 1
        %s614 = scalar_lea.sflag [#allocation6], %s613
        %s615 = sand.u32 %s191, 1
        %s616 = smul.addr %s615, 16
        %s617 = scalar_lea.vmem [#allocation5], %s616
        // Predicated region
        $region77: #{tpu_custom_call.1} parent=71 // pred_check
          %p618 = pneg %p204
        $region78: #{tpu_custom_call.1} parent=71 // pred_check_branch
          %620 = sbr.rel (%p618) target = $region80
        $region79: #{tpu_custom_call.1} parent=71 // pred_region
          %622 = dma.done %s614, 256
        $region80: #{tpu_custom_call.1} parent=71 // pred_fallthru
          _
        %s623 = sand.u32 %s41, 1
        %s624 = scalar_lea.sflag [#allocation6], %s623
        %s625 = sand.u32 %s295, 1
        %s626 = scalar_lea.vmem [#allocation7], %s625
        // Predicated region
        $region81: #{tpu_custom_call.1} parent=71 // pred_check
          %p627 = pneg %p308
        $region82: #{tpu_custom_call.1} parent=71 // pred_check_branch
          %629 = sbr.rel (%p627) target = $region84
        $region83: #{tpu_custom_call.1} parent=71 // pred_region
          %631 = dma.done %s624, 16
        $region84: #{tpu_custom_call.1} parent=71 // pred_fallthru
          _
        %s632 = sand.u32 %s347, 1
        %s633 = scalar_lea.sflag [#allocation9], %s632
        %s634 = sand.u32 %s347, 1
        %s635 = scalar_lea.vmem [#allocation8], %s634
        // Predicated region
        $region85: #{tpu_custom_call.1} parent=71 // pred_check
          %p636 = pneg %p360
        $region86: #{tpu_custom_call.1} parent=71 // pred_check_branch
          %638 = sbr.rel (%p636) target = $region88
        $region87: #{tpu_custom_call.1} parent=71 // pred_region
          %640 = dma.done %s633, 16
        $region88: #{tpu_custom_call.1} parent=71 // pred_fallthru
          _
        %s641 = smul.u32 2, %s45
        %p642 = scmp.lt.s32.totalorder %s641, 3
        %s643 = scalar_select %p642, %s641, 3
        %s644 = smul.addr %s643, 8
        %s645 = scalar_lea.vmem %s0, %s644
        %p646 = pneg %p74
        %p647 = pneg %p71
        %p648 = scmp.lt.s32.totalorder %s46, 1
        %s649 = scalar_select %p648, %s46, 1
        %s650 = smul.addr %s649, 4
        %s651 = smul.addr %s650, 4
        %s652 = scalar_lea.vmem %s1, %s651
        %p653 = pneg %p100
        %p654 = pneg %p97
        %s655 = sand.u32 %s113, 1
        %s656 = scalar_lea.sflag [#allocation3], %s655
        %s657 = sand.u32 %s113, 1
        %s658 = scalar_lea.vmem [#allocation2], %s657
        %p659 = pneg %p126
        %p660 = pneg %p123
        %p661 = scmp.lt.s32.totalorder %s46, 1
        %s662 = scalar_select %p661, %s46, 1
        %s663 = smul.addr %s662, 4
        %s664 = smul.addr %s663, 4
        %s665 = scalar_lea.vmem %s3, %s664
        %p666 = pneg %p152
        %p667 = pneg %p149
        %p668 = scmp.lt.s32.totalorder %s46, 1
        %s669 = scalar_select %p668, %s46, 1
        %s670 = scalar_lea.vmem %s4, %s669
        %p671 = pneg %p178
        %p672 = pneg %p175
        %s673 = sand.u32 %s41, 1
        %s674 = scalar_lea.sflag [#allocation6], %s673
        %s675 = sand.u32 %s191, 1
        %s676 = smul.addr %s675, 16
        %s677 = scalar_lea.vmem [#allocation5], %s676
        %p678 = pneg %p204
        %p679 = pneg %p201
        %p680 = scmp.lt.s32.totalorder %s46, 1
        %s681 = scalar_select %p680, %s46, 1
        %s682 = scalar_lea.vmem %s6, %s681
        %p683 = pneg %p230
        %p684 = pneg %p227
        %p685 = scmp.lt.s32.totalorder %s46, 1
        %s686 = scalar_select %p685, %s46, 1
        %s687 = smul.addr %s686, 8
        %s688 = smul.addr %s687, 4
        %s689 = scalar_lea.vmem %s7, %s688
        %p690 = pneg %p256
        %p691 = pneg %p253
        %p692 = scmp.lt.s32.totalorder %s46, 1
        %s693 = scalar_select %p692, %s46, 1
        %s694 = scalar_lea.vmem %s8, %s693
        %p695 = pneg %p282
        %p696 = pneg %p279
        %s697 = sand.u32 %s41, 1
        %s698 = scalar_lea.sflag [#allocation6], %s697
        %s699 = sand.u32 %s295, 1
        %s700 = scalar_lea.vmem [#allocation7], %s699
        %p701 = pneg %p308
        %p702 = pneg %p305
        %p703 = scmp.lt.s32.totalorder %s46, 1
        %s704 = scalar_select %p703, %s46, 1
        %s705 = scalar_lea.vmem %s10, %s704
        %p706 = pneg %p334
        %p707 = pneg %p331
        %s708 = sand.u32 %s347, 1
        %s709 = scalar_lea.sflag [#allocation9], %s708
        %s710 = sand.u32 %s347, 1
        %s711 = scalar_lea.vmem [#allocation8], %s710
        %p712 = pneg %p360
        %p713 = pneg %p357
        %p714 = scmp.lt.s32.totalorder %s46, 1
        %s715 = scalar_select %p714, %s46, 1
        %s716 = scalar_lea.vmem %s12, %s715
        %p717 = pneg %p386
        %p718 = pneg %p383
        %p719 = pneg %p412
        %p720 = pneg %p409
        %s721 = sand.u32 %s399, 1
        %s722 = scalar_lea.sflag [#allocation4], %s721
        %s723 = sand.u32 %s399, 1
        %s724 = smul.addr %s723, 16
        %s725 = scalar_lea.vmem [#allocation10], %s724
        %p726 = pneg %p442
        %p727 = pneg %p439
        %s728 = sand.u32 %s429, 1
        %s729 = scalar_lea.sflag [#allocation12], %s728
        %s730 = sand.u32 %s429, 1
        %s731 = smul.addr %s730, 32
        %s732 = scalar_lea.vmem [#allocation11], %s731
        %s733 = smul.u32 2, %s45
        %p734 = scmp.lt.s32.totalorder %s733, 3
        %s735 = scalar_select %p734, %s733, 3
        %s736 = smul.addr %s735, 8
        %s737 = scalar_lea.vmem %s0, %s736
        %s738 = smul.u32 2, %s45
        %p739 = scmp.lt.s32.totalorder %s46, 1
        %s740 = scalar_select %p739, %s46, 1
        %s741 = smul.addr %s740, 4
        %s742 = smul.addr %s741, 4
        %s743 = scalar_lea.vmem %s1, %s742
        %p744 = scmp.lt.s32.totalorder %s46, 1
        %s745 = scalar_select %p744, %s46, 1
        %s746 = smul.addr %s745, 4
        %s747 = smul.addr %s746, 4
        %s748 = scalar_lea.vmem %s3, %s747
        %p749 = scmp.lt.s32.totalorder %s46, 1
        %s750 = scalar_select %p749, %s46, 1
        %s751 = scalar_lea.vmem %s4, %s750
        %p752 = scmp.lt.s32.totalorder %s46, 1
        %s753 = scalar_select %p752, %s46, 1
        %s754 = scalar_lea.vmem %s6, %s753
        %p755 = scmp.lt.s32.totalorder %s46, 1
        %s756 = scalar_select %p755, %s46, 1
        %s757 = smul.addr %s756, 8
        %s758 = smul.addr %s757, 4
        %s759 = scalar_lea.vmem %s7, %s758
        %p760 = scmp.lt.s32.totalorder %s46, 1
        %s761 = scalar_select %p760, %s46, 1
        %s762 = scalar_lea.vmem %s8, %s761
        %p763 = scmp.lt.s32.totalorder %s46, 1
        %s764 = scalar_select %p763, %s46, 1
        %s765 = scalar_lea.vmem %s10, %s764
        %p766 = scmp.lt.s32.totalorder %s46, 1
        %s767 = scalar_select %p766, %s46, 1
        %s768 = scalar_lea.vmem %s12, %s767
        %s769 = smul.u32 2, %s45
        %s770 = smul.u32 %s46, 2
        %s771 = sadd.s32 %s770, %s45
        %s772 = smul.u32 2, %s771
        %p774 = scmp.eq.s32.totalorder %s46, 0
        // Predicated region
        $region89: #{tpu_custom_call.1} parent=71 // pred_check
          %p775 = pneg %p774
        $region90: #{tpu_custom_call.1} parent=71 // pred_check_branch
          %777 = sbr.rel (%p775) target = $region92
        $region91: #{tpu_custom_call.1} parent=71 // pred_region
          %v778 = vld [vmem:[%s737] sm:$0xff]
          %v779 = vld [vmem:[%s737 + $0x8] sm:$0xff]
          %vm780 = vcmask 261120
          %781 = vst.msk [vmem:[%s725] sm:$0xff] %vm780, %v778
          %782 = vst.msk [vmem:[%s725 + $0x8] sm:$0xff] %vm780, %v779
        $region92: #{tpu_custom_call.1} parent=71 // pred_fallthru
          _
        %v783 = vld [vmem:[%s725] sm:$0xff]
        %v784 = vld [vmem:[%s725 + $0x8] sm:$0xff]
        %v785 = vld [vmem:[%s626] sm:$0x1]
        %v786 = vld [vmem:[%s765] sm:$0x1]
        %vm787 = vcmask 261120
        %v788 = vsel %vm787, %v783, 0.0
        %789 = vadd.xlane.f32.xlu0 %v788
        %v790 = vpop.xlane.xlu0 %789
        %v791 = vsel %vm787, %v784, 0.0
        %792 = vadd.xlane.f32.xlu0 %v791
        %v793 = vpop.xlane.xlu0 %792
        %v794 = vrcp.pop 32.0
        %v795 = vmul.f32 32.0, %v794
        %v796 = vsub.f32 1.0, %v795
        %v797 = vmul.f32 %v794, %v796
        %v798 = vadd.f32 %v794, %v797
        %vm799 = vweird.f32 %v794
        %v800 = vsel %vm799, %v794, %v798
        %v801 = vmul.f32 %v790, %v800
        %v802 = vmul.f32 %v793, %v800
        %v803 = vsub.f32 %v783, %v801
        %v804 = vsub.f32 %v784, %v802
        %v805 = vmul.f32 %v803, %v803
        %v806 = vmul.f32 %v804, %v804
        %v807 = vsel %vm787, %v805, 0.0
        %808 = vadd.xlane.f32.xlu0 %v807
        %v809 = vpop.xlane.xlu0 %808
        %v810 = vsel %vm787, %v806, 0.0
        %811 = vadd.xlane.f32.xlu0 %v810
        %v812 = vpop.xlane.xlu0 %811
        %v813 = vmul.f32 %v809, %v800
        %v814 = vmul.f32 %v812, %v800
        %v815 = vadd.f32 %v813, 1e-05
        %v816 = vadd.f32 %v814, 1e-05
        %v817 = vrsqrt.pop %v815
        %v818 = vmul.f32 %v817, %v815
        %v819 = vmul.f32 %v818, %v817
        %v820 = vmul.f32 0.5, %v819
        %v821 = vsub.f32 1.5, %v820
        %v822 = vmul.f32 %v817, %v821
        %vm823 = vweird.f32 %v815
        %vm824 = vweird.f32 %v817
        %vm825 = vmor %vm823, %vm824
        %v826 = vsel %vm825, %v817, %v822
        %v827 = vrsqrt.pop %v816
        %v828 = vmul.f32 %v827, %v816
        %v829 = vmul.f32 %v828, %v827
        %v830 = vmul.f32 0.5, %v829
        %v831 = vsub.f32 1.5, %v830
        %v832 = vmul.f32 %v827, %v831
        %vm833 = vweird.f32 %v816
        %vm834 = vweird.f32 %v827
        %vm835 = vmor %vm833, %vm834
        %v836 = vsel %vm835, %v827, %v832
        %v837 = vmul.f32 %v803, %v826
        %v838 = vmul.f32 %v804, %v836
        %v840 = vperm.slane %v785, 0
        %v842 = vmul.f32 %v837, %v840
        %v843 = vmul.f32 %v838, %v840
        %v845 = vperm.slane %v786, 0
        %v847 = vadd.f32 %v842, %v845
        %v848 = vadd.f32 %v843, %v845
        %v849 = vpack.c.bf16 %v848, %v847
        %v850 = vld [vmem:[%s743] sm:$0xf]
        %v851 = vld [vmem:[%s743 + $0x4] sm:$0xf]
        %v852 = vld [vmem:[%s743 + $0x8] sm:$0xf]
        %v853 = vld [vmem:[%s743 + $0xc] sm:$0xf]
        %v854 = vld [vmem:[%s607] sm:$0x1]
        %v856 = vperm.slane %v854, 0
        %v862 = vunpack.c.l.b16 %v850
        %v863 = vunpack.c.l.b16 %v851
        %v864 = vunpack.c.l.b16 %v852
        %v865 = vunpack.c.l.b16 %v853
        %v866 = vpack.c.b16 %v863, %v862
        %v867 = vpack.c.b16 %v865, %v864
        %v871 = vsel %vm787, %v849, 0
        %873 = vmatpush.bf16.msra.mxu0 0
        %874 = vmatpush.bf16.msra.mxu0 0
        %875 = vmatpush.bf16.msra.mxu0 0
        %876 = vmatpush.bf16.msra.mxu0 0
        %877 = vmatpush.bf16.msra.mxu0 0
        %878 = vmatpush.bf16.msra.mxu0 0
        %879 = vmatpush.bf16.msra.mxu0 %v867
        %880 = vmatpush.bf16.msra.mxu0 %v866
        %881 = vmatmul.bf16.gmra.mxu0 %v871
        %v882 = vpop.f32.mrf.mxu0
        %v883 = vadd.f32 %v856, %v882
        %v884 = vpop.f32.mrf.mxu0
        %v885 = vadd.f32 %v856, %v884
        %886 = vdwg.mxu0
        %888 = vrot.lane.b32.xlu0 %v883, 120
        %v889 = vpop.permute.xlu0 %888
        %891 = vrot.lane.b32.xlu0 %v883, 112
        %v892 = vpop.permute.xlu0 %891
        %894 = vrot.lane.b32.xlu0 %v883, 104
        %v895 = vpop.permute.xlu0 %894
        %v897 = vrot.slane %v892, 4
        %vm898 = vcmask 1047556
        %v899 = vsel %vm898, %v897, %v883
        %v900 = vrot.slane %v883, 4
        %v901 = vsel %vm898, %v892, %v900
        %v903 = vunpack.c.l.s4 1983009808
        %v904 = vunpack.c.0.s8 %v903
        %v905 = vperm.slane %v899, %v904
        %v907 = vunpack.c.l.s4 1983009808
        %v908 = vunpack.c.0.s8 %v907
        %v909 = vperm.slane %v901, %v908
        %v910 = vrot.slane %v895, 4
        %v911 = vsel %vm898, %v910, %v889
        %v912 = vrot.slane %v889, 4
        %v913 = vsel %vm898, %v895, %v912
        %v915 = vunpack.c.l.s4 1983009808
        %v916 = vunpack.c.0.s8 %v915
        %v917 = vperm.slane %v911, %v916
        %v919 = vunpack.c.l.s4 1983009808
        %v920 = vunpack.c.0.s8 %v919
        %v921 = vperm.slane %v913, %v920
        %v922 = vrot.slane %v917, 4
        %v923 = vsel %vm898, %v922, %v905
        %v924 = vrot.slane %v905, 4
        %v925 = vsel %vm898, %v917, %v924
        %v927 = vunpack.c.l.s4 1934713408
        %v928 = vunpack.c.0.s8 %v927
        %v929 = vperm.slane %v923, %v928
        %v931 = vunpack.c.l.s4 1934713408
        %v932 = vunpack.c.0.s8 %v931
        %v933 = vperm.slane %v925, %v932
        %v934 = vrot.slane %v921, 4
        %v935 = vsel %vm898, %v934, %v909
        %v936 = vrot.slane %v909, 4
        %v937 = vsel %vm898, %v921, %v936
        %v939 = vunpack.c.l.s4 1934713408
        %v940 = vunpack.c.0.s8 %v939
        %v941 = vperm.slane %v935, %v940
        %v943 = vunpack.c.l.s4 1934713408
        %v944 = vunpack.c.0.s8 %v943
        %v945 = vperm.slane %v937, %v944
        %v946 = vrot.slane %v929, 4
        %v947 = vsel %vm898, 0.0, %v946
        %v948 = vrot.slane %v933, 4
        %v949 = vsel %vm898, 0.0, %v948
        %v950 = vrot.slane %v941, 4
        %v951 = vsel %vm898, 0.0, %v950
        %v952 = vrot.slane %v945, 4
        %v953 = vsel %vm898, 0.0, %v952
        %v954 = vsel %vm898, %v948, %v929
        %v956 = vunpack.c.l.s4 1983009808
        %v957 = vunpack.c.0.s8 %v956
        %v958 = vperm.slane %v954, %v957
        %v959 = vrot.slane %v949, 4
        %v960 = vsel %vm898, %v959, %v947
        %v962 = vunpack.c.l.s4 1983009808
        %v963 = vunpack.c.0.s8 %v962
        %v964 = vperm.slane %v960, %v963
        %v965 = vsel %vm898, %v952, %v941
        %v967 = vunpack.c.l.s4 1983009808
        %v968 = vunpack.c.0.s8 %v967
        %v969 = vperm.slane %v965, %v968
        %v970 = vrot.slane %v953, 4
        %v971 = vsel %vm898, %v970, %v951
        %v973 = vunpack.c.l.s4 1983009808
        %v974 = vunpack.c.0.s8 %v973
        %v975 = vperm.slane %v971, %v974
        %v976 = vrot.slane %v964, 4
        %v977 = vsel %vm898, %v976, %v958
        %v978 = vrot.slane %v958, 4
        %v979 = vsel %vm898, %v964, %v978
        %v981 = vunpack.c.l.s4 1934713408
        %v982 = vunpack.c.0.s8 %v981
        %v983 = vperm.slane %v977, %v982
        %v985 = vunpack.c.l.s4 1934713408
        %v986 = vunpack.c.0.s8 %v985
        %v987 = vperm.slane %v979, %v986
        %v988 = vrot.slane %v975, 4
        %v989 = vsel %vm898, %v988, %v969
        %v990 = vrot.slane %v969, 4
        %v991 = vsel %vm898, %v975, %v990
        %v993 = vunpack.c.l.s4 1934713408
        %v994 = vunpack.c.0.s8 %v993
        %v995 = vperm.slane %v989, %v994
        %v997 = vunpack.c.l.s4 1934713408
        %v998 = vunpack.c.0.s8 %v997
        %v999 = vperm.slane %v991, %v998
        %v1000 = vrot.slane %v995, 4
        %v1001 = vsel %vm898, %v1000, %v983
        %v1002 = vrot.slane %v983, 4
        %v1003 = vsel %vm898, %v995, %v1002
        %v1004 = vrot.slane %v999, 4
        %v1005 = vsel %vm898, %v1004, %v987
        %v1006 = vrot.slane %v987, 4
        %v1007 = vsel %vm898, %v999, %v1006
        %v1008 = vpack.c.bf16 %v1001, %v1001
        %v1009 = vpack.c.bf16 %v1003, %v1003
        %v1010 = vpack.c.bf16 %v1005, %v1005
        %v1011 = vpack.c.bf16 %v1007, %v1007
        %1012 = vrot.lane.b32.xlu0 %v883, 96
        %v1013 = vpop.permute.xlu0 %1012
        %1014 = vrot.lane.b32.xlu0 %v889, 96
        %v1015 = vpop.permute.xlu0 %1014
        %1016 = vrot.lane.b32.xlu0 %v892, 96
        %v1017 = vpop.permute.xlu0 %1016
        %1018 = vrot.lane.b32.xlu0 %v895, 96
        %v1019 = vpop.permute.xlu0 %1018
        %v1024 = vrot.slane %v1017, 4
        %v1025 = vsel %vm898, %v1024, %v1013
        %v1026 = vrot.slane %v1013, 4
        %v1027 = vsel %vm898, %v1017, %v1026
        %v1029 = vunpack.c.l.s4 1983009808
        %v1030 = vunpack.c.0.s8 %v1029
        %v1031 = vperm.slane %v1025, %v1030
        %v1033 = vunpack.c.l.s4 1983009808
        %v1034 = vunpack.c.0.s8 %v1033
        %v1035 = vperm.slane %v1027, %v1034
        %v1036 = vrot.slane %v1019, 4
        %v1037 = vsel %vm898, %v1036, %v1015
        %v1038 = vrot.slane %v1015, 4
        %v1039 = vsel %vm898, %v1019, %v1038
        %v1041 = vunpack.c.l.s4 1983009808
        %v1042 = vunpack.c.0.s8 %v1041
        %v1043 = vperm.slane %v1037, %v1042
        %v1045 = vunpack.c.l.s4 1983009808
        %v1046 = vunpack.c.0.s8 %v1045
        %v1047 = vperm.slane %v1039, %v1046
        %v1048 = vrot.slane %v1043, 4
        %v1049 = vsel %vm898, %v1048, %v1031
        %v1050 = vrot.slane %v1031, 4
        %v1051 = vsel %vm898, %v1043, %v1050
        %v1053 = vunpack.c.l.s4 1934713408
        %v1054 = vunpack.c.0.s8 %v1053
        %v1055 = vperm.slane %v1049, %v1054
        %v1057 = vunpack.c.l.s4 1934713408
        %v1058 = vunpack.c.0.s8 %v1057
        %v1059 = vperm.slane %v1051, %v1058
        %v1060 = vrot.slane %v1047, 4
        %v1061 = vsel %vm898, %v1060, %v1035
        %v1062 = vrot.slane %v1035, 4
        %v1063 = vsel %vm898, %v1047, %v1062
        %v1065 = vunpack.c.l.s4 1934713408
        %v1066 = vunpack.c.0.s8 %v1065
        %v1067 = vperm.slane %v1061, %v1066
        %v1069 = vunpack.c.l.s4 1934713408
        %v1070 = vunpack.c.0.s8 %v1069
        %v1071 = vperm.slane %v1063, %v1070
        %v1072 = vrot.slane %v1055, 4
        %v1073 = vsel %vm898, 0.0, %v1072
        %v1074 = vrot.slane %v1059, 4
        %v1075 = vsel %vm898, 0.0, %v1074
        %v1076 = vrot.slane %v1067, 4
        %v1077 = vsel %vm898, 0.0, %v1076
        %v1078 = vrot.slane %v1071, 4
        %v1079 = vsel %vm898, 0.0, %v1078
        %v1080 = vsel %vm898, %v1074, %v1055
        %v1082 = vunpack.c.l.s4 1983009808
        %v1083 = vunpack.c.0.s8 %v1082
        %v1084 = vperm.slane %v1080, %v1083
        %v1085 = vrot.slane %v1075, 4
        %v1086 = vsel %vm898, %v1085, %v1073
        %v1088 = vunpack.c.l.s4 1983009808
        %v1089 = vunpack.c.0.s8 %v1088
        %v1090 = vperm.slane %v1086, %v1089
        %v1091 = vsel %vm898, %v1078, %v1067
        %v1093 = vunpack.c.l.s4 1983009808
        %v1094 = vunpack.c.0.s8 %v1093
        %v1095 = vperm.slane %v1091, %v1094
        %v1096 = vrot.slane %v1079, 4
        %v1097 = vsel %vm898, %v1096, %v1077
        %v1099 = vunpack.c.l.s4 1983009808
        %v1100 = vunpack.c.0.s8 %v1099
        %v1101 = vperm.slane %v1097, %v1100
        %v1102 = vrot.slane %v1090, 4
        %v1103 = vsel %vm898, %v1102, %v1084
        %v1104 = vrot.slane %v1084, 4
        %v1105 = vsel %vm898, %v1090, %v1104
        %v1107 = vunpack.c.l.s4 1934713408
        %v1108 = vunpack.c.0.s8 %v1107
        %v1109 = vperm.slane %v1103, %v1108
        %v1111 = vunpack.c.l.s4 1934713408
        %v1112 = vunpack.c.0.s8 %v1111
        %v1113 = vperm.slane %v1105, %v1112
        %v1114 = vrot.slane %v1101, 4
        %v1115 = vsel %vm898, %v1114, %v1095
        %v1116 = vrot.slane %v1095, 4
        %v1117 = vsel %vm898, %v1101, %v1116
        %v1119 = vunpack.c.l.s4 1934713408
        %v1120 = vunpack.c.0.s8 %v1119
        %v1121 = vperm.slane %v1115, %v1120
        %v1123 = vunpack.c.l.s4 1934713408
        %v1124 = vunpack.c.0.s8 %v1123
        %v1125 = vperm.slane %v1117, %v1124
        %v1126 = vrot.slane %v1121, 4
        %v1127 = vsel %vm898, %v1126, %v1109
        %v1128 = vrot.slane %v1109, 4
        %v1129 = vsel %vm898, %v1121, %v1128
        %v1130 = vrot.slane %v1125, 4
        %v1131 = vsel %vm898, %v1130, %v1113
        %v1132 = vrot.slane %v1113, 4
        %v1133 = vsel %vm898, %v1125, %v1132
        %v1134 = vpack.c.bf16 %v1127, %v1127
        %v1135 = vpack.c.bf16 %v1129, %v1129
        %v1136 = vpack.c.bf16 %v1131, %v1131
        %v1137 = vpack.c.bf16 %v1133, %v1133
        %1138 = vrot.lane.b32.xlu0 %v883, 64
        %v1139 = vpop.permute.xlu0 %1138
        %1140 = vrot.lane.b32.xlu0 %v889, 64
        %v1141 = vpop.permute.xlu0 %1140
        %1142 = vrot.lane.b32.xlu0 %v892, 64
        %v1143 = vpop.permute.xlu0 %1142
        %1144 = vrot.lane.b32.xlu0 %v895, 64
        %v1145 = vpop.permute.xlu0 %1144
        %v1150 = vrot.slane %v1143, 4
        %v1151 = vsel %vm898, %v1150, %v1139
        %v1152 = vrot.slane %v1139, 4
        %v1153 = vsel %vm898, %v1143, %v1152
        %v1155 = vunpack.c.l.s4 1983009808
        %v1156 = vunpack.c.0.s8 %v1155
        %v1157 = vperm.slane %v1151, %v1156
        %v1159 = vunpack.c.l.s4 1983009808
        %v1160 = vunpack.c.0.s8 %v1159
        %v1161 = vperm.slane %v1153, %v1160
        %v1162 = vrot.slane %v1145, 4
        %v1163 = vsel %vm898, %v1162, %v1141
        %v1164 = vrot.slane %v1141, 4
        %v1165 = vsel %vm898, %v1145, %v1164
        %v1167 = vunpack.c.l.s4 1983009808
        %v1168 = vunpack.c.0.s8 %v1167
        %v1169 = vperm.slane %v1163, %v1168
        %v1171 = vunpack.c.l.s4 1983009808
        %v1172 = vunpack.c.0.s8 %v1171
        %v1173 = vperm.slane %v1165, %v1172
        %v1174 = vrot.slane %v1169, 4
        %v1175 = vsel %vm898, %v1174, %v1157
        %v1176 = vrot.slane %v1157, 4
        %v1177 = vsel %vm898, %v1169, %v1176
        %v1179 = vunpack.c.l.s4 1934713408
        %v1180 = vunpack.c.0.s8 %v1179
        %v1181 = vperm.slane %v1175, %v1180
        %v1183 = vunpack.c.l.s4 1934713408
        %v1184 = vunpack.c.0.s8 %v1183
        %v1185 = vperm.slane %v1177, %v1184
        %v1186 = vrot.slane %v1173, 4
        %v1187 = vsel %vm898, %v1186, %v1161
        %v1188 = vrot.slane %v1161, 4
        %v1189 = vsel %vm898, %v1173, %v1188
        %v1191 = vunpack.c.l.s4 1934713408
        %v1192 = vunpack.c.0.s8 %v1191
        %v1193 = vperm.slane %v1187, %v1192
        %v1195 = vunpack.c.l.s4 1934713408
        %v1196 = vunpack.c.0.s8 %v1195
        %v1197 = vperm.slane %v1189, %v1196
        %v1198 = vrot.slane %v1181, 4
        %v1199 = vsel %vm898, 0.0, %v1198
        %v1200 = vrot.slane %v1185, 4
        %v1201 = vsel %vm898, 0.0, %v1200
        %v1202 = vrot.slane %v1193, 4
        %v1203 = vsel %vm898, 0.0, %v1202
        %v1204 = vrot.slane %v1197, 4
        %v1205 = vsel %vm898, 0.0, %v1204
        %v1206 = vsel %vm898, %v1200, %v1181
        %v1208 = vunpack.c.l.s4 1983009808
        %v1209 = vunpack.c.0.s8 %v1208
        %v1210 = vperm.slane %v1206, %v1209
        %v1211 = vrot.slane %v1201, 4
        %v1212 = vsel %vm898, %v1211, %v1199
        %v1214 = vunpack.c.l.s4 1983009808
        %v1215 = vunpack.c.0.s8 %v1214
        %v1216 = vperm.slane %v1212, %v1215
        %v1217 = vsel %vm898, %v1204, %v1193
        %v1219 = vunpack.c.l.s4 1983009808
        %v1220 = vunpack.c.0.s8 %v1219
        %v1221 = vperm.slane %v1217, %v1220
        %v1222 = vrot.slane %v1205, 4
        %v1223 = vsel %vm898, %v1222, %v1203
        %v1225 = vunpack.c.l.s4 1983009808
        %v1226 = vunpack.c.0.s8 %v1225
        %v1227 = vperm.slane %v1223, %v1226
        %v1228 = vrot.slane %v1216, 4
        %v1229 = vsel %vm898, %v1228, %v1210
        %v1230 = vrot.slane %v1210, 4
        %v1231 = vsel %vm898, %v1216, %v1230
        %v1233 = vunpack.c.l.s4 1934713408
        %v1234 = vunpack.c.0.s8 %v1233
        %v1235 = vperm.slane %v1229, %v1234
        %v1237 = vunpack.c.l.s4 1934713408
        %v1238 = vunpack.c.0.s8 %v1237
        %v1239 = vperm.slane %v1231, %v1238
        %v1240 = vrot.slane %v1227, 4
        %v1241 = vsel %vm898, %v1240, %v1221
        %v1242 = vrot.slane %v1221, 4
        %v1243 = vsel %vm898, %v1227, %v1242
        %v1245 = vunpack.c.l.s4 1934713408
        %v1246 = vunpack.c.0.s8 %v1245
        %v1247 = vperm.slane %v1241, %v1246
        %v1249 = vunpack.c.l.s4 1934713408
        %v1250 = vunpack.c.0.s8 %v1249
        %v1251 = vperm.slane %v1243, %v1250
        %v1252 = vrot.slane %v1247, 4
        %v1253 = vsel %vm898, %v1252, %v1235
        %v1254 = vrot.slane %v1235, 4
        %v1255 = vsel %vm898, %v1247, %v1254
        %v1256 = vrot.slane %v1251, 4
        %v1257 = vsel %vm898, %v1256, %v1239
        %v1258 = vrot.slane %v1239, 4
        %v1259 = vsel %vm898, %v1251, %v1258
        %v1260 = vpack.c.bf16 %v1253, %v1253
        %v1261 = vpack.c.bf16 %v1255, %v1255
        %v1262 = vpack.c.bf16 %v1257, %v1257
        %v1263 = vpack.c.bf16 %v1259, %v1259
        %vm1264 = vcmask 64512
        %v1266 = vsel %vm1264, %v1008, 0
        %v1269 = vsel %vm1264, %v1134, 0
        %1271 = vmatpush.bf16.xpose.msra.mxu0 0
        %1272 = vmatpush.bf16.xpose.msra.mxu0 0
        %1273 = vmatpush.bf16.xpose.msra.mxu0 0
        %1274 = vmatpush.bf16.xpose.msra.mxu0 0
        %1275 = vmatpush.bf16.xpose.msra.mxu0 0
        %1276 = vmatpush.bf16.xpose.msra.mxu0 0
        %1277 = vmatpush.bf16.xpose.msra.mxu0 0
        %1278 = vmatpush.bf16.xpose.msra.mxu0 %v1269
        %1279 = vmatmul.bf16.gmra.mxu0 %v1266
        %v1280 = vpop.f32.mrf.mxu0
        %v1281 = vadd.f32 0.0, %v1280
        %v1282 = vpop.f32.mrf.mxu0
        %1283 = vdwg.mxu0
        %v1285 = vsel %vm1264, %v1009, 0
        %v1288 = vsel %vm1264, %v1135, 0
        %1290 = vmatpush.bf16.xpose.msra.mxu0 0
        %1291 = vmatpush.bf16.xpose.msra.mxu0 0
        %1292 = vmatpush.bf16.xpose.msra.mxu0 0
        %1293 = vmatpush.bf16.xpose.msra.mxu0 0
        %1294 = vmatpush.bf16.xpose.msra.mxu0 0
        %1295 = vmatpush.bf16.xpose.msra.mxu0 0
        %1296 = vmatpush.bf16.xpose.msra.mxu0 0
        %1297 = vmatpush.bf16.xpose.msra.mxu0 %v1288
        %1298 = vmatmul.bf16.gmra.mxu0 %v1285
        %v1299 = vpop.f32.mrf.mxu0
        %v1300 = vadd.f32 0.0, %v1299
        %v1301 = vpop.f32.mrf.mxu0
        %1302 = vdwg.mxu0
        %v1304 = vsel %vm1264, %v1010, 0
        %v1307 = vsel %vm1264, %v1136, 0
        %1309 = vmatpush.bf16.xpose.msra.mxu0 0
        %1310 = vmatpush.bf16.xpose.msra.mxu0 0
        %1311 = vmatpush.bf16.xpose.msra.mxu0 0
        %1312 = vmatpush.bf16.xpose.msra.mxu0 0
        %1313 = vmatpush.bf16.xpose.msra.mxu0 0
        %1314 = vmatpush.bf16.xpose.msra.mxu0 0
        %1315 = vmatpush.bf16.xpose.msra.mxu0 0
        %1316 = vmatpush.bf16.xpose.msra.mxu0 %v1307
        %1317 = vmatmul.bf16.gmra.mxu0 %v1304
        %v1318 = vpop.f32.mrf.mxu0
        %v1319 = vadd.f32 0.0, %v1318
        %v1320 = vpop.f32.mrf.mxu0
        %1321 = vdwg.mxu0
        %v1323 = vsel %vm1264, %v1011, 0
        %v1326 = vsel %vm1264, %v1137, 0
        %1328 = vmatpush.bf16.xpose.msra.mxu0 0
        %1329 = vmatpush.bf16.xpose.msra.mxu0 0
        %1330 = vmatpush.bf16.xpose.msra.mxu0 0
        %1331 = vmatpush.bf16.xpose.msra.mxu0 0
        %1332 = vmatpush.bf16.xpose.msra.mxu0 0
        %1333 = vmatpush.bf16.xpose.msra.mxu0 0
        %1334 = vmatpush.bf16.xpose.msra.mxu0 0
        %1335 = vmatpush.bf16.xpose.msra.mxu0 %v1326
        %1336 = vmatmul.bf16.gmra.mxu0 %v1323
        %v1337 = vpop.f32.mrf.mxu0
        %v1338 = vadd.f32 0.0, %v1337
        %v1339 = vpop.f32.mrf.mxu0
        %1340 = vdwg.mxu0
        %v1341 = vsel %vm1264, %v1281, -inf
        %1342 = vmax.xlane.f32.xlu0 %v1341
        %v1343 = vpop.xlane.xlu0 %1342
        %v1344 = vsel %vm1264, %v1300, -inf
        %1345 = vmax.xlane.f32.xlu0 %v1344
        %v1346 = vpop.xlane.xlu0 %1345
        %v1347 = vsel %vm1264, %v1319, -inf
        %1348 = vmax.xlane.f32.xlu0 %v1347
        %v1349 = vpop.xlane.xlu0 %1348
        %v1350 = vsel %vm1264, %v1338, -inf
        %1351 = vmax.xlane.f32.xlu0 %v1350
        %v1352 = vpop.xlane.xlu0 %1351
        %v1353 = vsub.f32 %v1281, %v1343
        %v1354 = vsub.f32 %v1300, %v1346
        %v1355 = vsub.f32 %v1319, %v1349
        %v1356 = vsub.f32 %v1338, %v1352
        %v1357 = vmul.f32 %v1353, 1.442695
        %v1358 = vpow.pop %v1357
        %v1359 = vmul.f32 %v1354, 1.442695
        %v1360 = vpow.pop %v1359
        %v1361 = vmul.f32 %v1355, 1.442695
        %v1362 = vpow.pop %v1361
        %v1363 = vmul.f32 %v1356, 1.442695
        %v1364 = vpow.pop %v1363
        %v1365 = vsel %vm1264, %v1358, 0.0
        %1366 = vadd.xlane.f32.xlu0 %v1365
        %v1367 = vpop.xlane.xlu0 %1366
        %v1368 = vsel %vm1264, %v1360, 0.0
        %1369 = vadd.xlane.f32.xlu0 %v1368
        %v1370 = vpop.xlane.xlu0 %1369
        %v1371 = vsel %vm1264, %v1362, 0.0
        %1372 = vadd.xlane.f32.xlu0 %v1371
        %v1373 = vpop.xlane.xlu0 %1372
        %v1374 = vsel %vm1264, %v1364, 0.0
        %1375 = vadd.xlane.f32.xlu0 %v1374
        %v1376 = vpop.xlane.xlu0 %1375
        %v1377 = vrcp.pop %v1367
        %v1378 = vmul.f32 %v1367, %v1377
        %v1379 = vsub.f32 1.0, %v1378
        %v1380 = vmul.f32 %v1377, %v1379
        %v1381 = vadd.f32 %v1377, %v1380
        %vm1382 = vweird.f32 %v1367
        %vm1383 = vweird.f32 %v1377
        %vm1384 = vmor %vm1382, %vm1383
        %v1385 = vsel %vm1384, %v1377, %v1381
        %v1386 = vand.u32 2147483647, %v1367
        %vm1387 = vcmp.eq.f32.partialorder %v1386, 8.507059e+37
        %v1388 = vand.u32 %v1367, 2147483648
        %v1389 = vor.u32 1.1754944e-38, %v1388
        %v1390 = vsel %vm1387, %v1389, %v1385
        %v1391 = vrcp.pop %v1370
        %v1392 = vmul.f32 %v1370, %v1391
        %v1393 = vsub.f32 1.0, %v1392
        %v1394 = vmul.f32 %v1391, %v1393
        %v1395 = vadd.f32 %v1391, %v1394
        %vm1396 = vweird.f32 %v1370
        %vm1397 = vweird.f32 %v1391
        %vm1398 = vmor %vm1396, %vm1397
        %v1399 = vsel %vm1398, %v1391, %v1395
        %v1400 = vand.u32 2147483647, %v1370
        %vm1401 = vcmp.eq.f32.partialorder %v1400, 8.507059e+37
        %v1402 = vand.u32 %v1370, 2147483648
        %v1403 = vor.u32 1.1754944e-38, %v1402
        %v1404 = vsel %vm1401, %v1403, %v1399
        %v1405 = vrcp.pop %v1373
        %v1406 = vmul.f32 %v1373, %v1405
        %v1407 = vsub.f32 1.0, %v1406
        %v1408 = vmul.f32 %v1405, %v1407
        %v1409 = vadd.f32 %v1405, %v1408
        %vm1410 = vweird.f32 %v1373
        %vm1411 = vweird.f32 %v1405
        %vm1412 = vmor %vm1410, %vm1411
        %v1413 = vsel %vm1412, %v1405, %v1409
        %v1414 = vand.u32 2147483647, %v1373
        %vm1415 = vcmp.eq.f32.partialorder %v1414, 8.507059e+37
        %v1416 = vand.u32 %v1373, 2147483648
        %v1417 = vor.u32 1.1754944e-38, %v1416
        %v1418 = vsel %vm1415, %v1417, %v1413
        %v1419 = vrcp.pop %v1376
        %v1420 = vmul.f32 %v1376, %v1419
        %v1421 = vsub.f32 1.0, %v1420
        %v1422 = vmul.f32 %v1419, %v1421
        %v1423 = vadd.f32 %v1419, %v1422
        %vm1424 = vweird.f32 %v1376
        %vm1425 = vweird.f32 %v1419
        %vm1426 = vmor %vm1424, %vm1425
        %v1427 = vsel %vm1426, %v1419, %v1423
        %v1428 = vand.u32 2147483647, %v1376
        %vm1429 = vcmp.eq.f32.partialorder %v1428, 8.507059e+37
        %v1430 = vand.u32 %v1376, 2147483648
        %v1431 = vor.u32 1.1754944e-38, %v1430
        %v1432 = vsel %vm1429, %v1431, %v1427
        %v1433 = vmul.f32 %v1358, %v1390
        %v1434 = vmul.f32 %v1360, %v1404
        %v1435 = vmul.f32 %v1362, %v1418
        %v1436 = vmul.f32 %v1364, %v1432
        %v1437 = vpack.c.bf16 %v1433, %v1433
        %v1438 = vpack.c.bf16 %v1434, %v1434
        %v1439 = vpack.c.bf16 %v1435, %v1435
        %v1440 = vpack.c.bf16 %v1436, %v1436
        %vm1441 = vcmask 60416
        %1442 = vst.msk [vmem:[%s732] sm:$0xf] %vm1441, %v1437
        %1443 = vst.msk [vmem:[%s732 + $0x4] sm:$0xf] %vm1441, %v1438
        %1444 = vst.msk [vmem:[%s732 + $0x8] sm:$0xf] %vm1441, %v1439
        %1445 = vst.msk [vmem:[%s732 + $0xc] sm:$0xf] %vm1441, %v1440
        %v1447 = vsel %vm1264, %v1437, 0
        %vm1449 = vcmask 1043456
        %v1451 = vsel %vm1449, %v1260, 0
        %1453 = vmatpush.bf16.msra.mxu0 0
        %1454 = vmatpush.bf16.msra.mxu0 0
        %1455 = vmatpush.bf16.msra.mxu0 0
        %1456 = vmatpush.bf16.msra.mxu0 0
        %1457 = vmatpush.bf16.msra.mxu0 0
        %1458 = vmatpush.bf16.msra.mxu0 0
        %1459 = vmatpush.bf16.msra.mxu0 0
        %1460 = vmatpush.bf16.msra.mxu0 %v1451
        %1461 = vmatmul.bf16.gmra.mxu0 %v1447
        %v1462 = vpop.f32.mrf.mxu0
        %v1463 = vadd.f32 0.0, %v1462
        %v1464 = vpop.f32.mrf.mxu0
        %1465 = vdwg.mxu0
        %v1467 = vsel %vm1264, %v1438, 0
        %v1470 = vsel %vm1449, %v1261, 0
        %1472 = vmatpush.bf16.msra.mxu0 0
        %1473 = vmatpush.bf16.msra.mxu0 0
        %1474 = vmatpush.bf16.msra.mxu0 0
        %1475 = vmatpush.bf16.msra.mxu0 0
        %1476 = vmatpush.bf16.msra.mxu0 0
        %1477 = vmatpush.bf16.msra.mxu0 0
        %1478 = vmatpush.bf16.msra.mxu0 0
        %1479 = vmatpush.bf16.msra.mxu0 %v1470
        %1480 = vmatmul.bf16.gmra.mxu0 %v1467
        %v1481 = vpop.f32.mrf.mxu0
        %v1482 = vadd.f32 0.0, %v1481
        %v1483 = vpop.f32.mrf.mxu0
        %1484 = vdwg.mxu0
        %v1486 = vsel %vm1264, %v1439, 0
        %v1489 = vsel %vm1449, %v1262, 0
        %1491 = vmatpush.bf16.msra.mxu0 0
        %1492 = vmatpush.bf16.msra.mxu0 0
        %1493 = vmatpush.bf16.msra.mxu0 0
        %1494 = vmatpush.bf16.msra.mxu0 0
        %1495 = vmatpush.bf16.msra.mxu0 0
        %1496 = vmatpush.bf16.msra.mxu0 0
        %1497 = vmatpush.bf16.msra.mxu0 0
        %1498 = vmatpush.bf16.msra.mxu0 %v1489
        %1499 = vmatmul.bf16.gmra.mxu0 %v1486
        %v1500 = vpop.f32.mrf.mxu0
        %v1501 = vadd.f32 0.0, %v1500
        %v1502 = vpop.f32.mrf.mxu0
        %1503 = vdwg.mxu0
        %v1505 = vsel %vm1264, %v1440, 0
        %v1508 = vsel %vm1449, %v1263, 0
        %1510 = vmatpush.bf16.msra.mxu0 0
        %1511 = vmatpush.bf16.msra.mxu0 0
        %1512 = vmatpush.bf16.msra.mxu0 0
        %1513 = vmatpush.bf16.msra.mxu0 0
        %1514 = vmatpush.bf16.msra.mxu0 0
        %1515 = vmatpush.bf16.msra.mxu0 0
        %1516 = vmatpush.bf16.msra.mxu0 0
        %1517 = vmatpush.bf16.msra.mxu0 %v1508
        %1518 = vmatmul.bf16.gmra.mxu0 %v1505
        %v1519 = vpop.f32.mrf.mxu0
        %v1520 = vadd.f32 0.0, %v1519
        %v1521 = vpop.f32.mrf.mxu0
        %1522 = vdwg.mxu0
        %v1523 = vrot.slane %v1501, 4
        %v1524 = vsel %vm898, %v1523, %v1463
        %v1525 = vrot.slane %v1463, 4
        %v1526 = vsel %vm898, %v1501, %v1525
        %v1528 = vunpack.c.l.s4 1983009808
        %v1529 = vunpack.c.0.s8 %v1528
        %v1530 = vperm.slane %v1524, %v1529
        %v1532 = vunpack.c.l.s4 1983009808
        %v1533 = vunpack.c.0.s8 %v1532
        %v1534 = vperm.slane %v1526, %v1533
        %v1535 = vrot.slane %v1520, 4
        %v1536 = vsel %vm898, %v1535, %v1482
        %v1537 = vrot.slane %v1482, 4
        %v1538 = vsel %vm898, %v1520, %v1537
        %v1540 = vunpack.c.l.s4 1983009808
        %v1541 = vunpack.c.0.s8 %v1540
        %v1542 = vperm.slane %v1536, %v1541
        %v1544 = vunpack.c.l.s4 1983009808
        %v1545 = vunpack.c.0.s8 %v1544
        %v1546 = vperm.slane %v1538, %v1545
        %v1547 = vrot.slane %v1542, 4
        %v1548 = vsel %vm898, %v1547, %v1530
        %v1549 = vrot.slane %v1530, 4
        %v1550 = vsel %vm898, %v1542, %v1549
        %v1552 = vunpack.c.l.s4 1934713408
        %v1553 = vunpack.c.0.s8 %v1552
        %v1554 = vperm.slane %v1548, %v1553
        %v1556 = vunpack.c.l.s4 1934713408
        %v1557 = vunpack.c.0.s8 %v1556
        %v1558 = vperm.slane %v1550, %v1557
        %v1559 = vrot.slane %v1546, 4
        %v1560 = vsel %vm898, %v1559, %v1534
        %v1561 = vrot.slane %v1534, 4
        %v1562 = vsel %vm898, %v1546, %v1561
        %v1564 = vunpack.c.l.s4 1934713408
        %v1565 = vunpack.c.0.s8 %v1564
        %v1566 = vperm.slane %v1560, %v1565
        %v1568 = vunpack.c.l.s4 1934713408
        %v1569 = vunpack.c.0.s8 %v1568
        %v1570 = vperm.slane %v1562, %v1569
        %v1571 = vrot.slane %v1554, 4
        %v1572 = vsel %vm898, 0.0, %v1571
        %v1573 = vrot.slane %v1558, 4
        %v1574 = vsel %vm898, 0.0, %v1573
        %v1575 = vrot.slane %v1566, 4
        %v1576 = vsel %vm898, 0.0, %v1575
        %v1577 = vrot.slane %v1570, 4
        %v1578 = vsel %vm898, 0.0, %v1577
        %v1579 = vsel %vm898, %v1573, %v1554
        %v1581 = vunpack.c.l.s4 1983009808
        %v1582 = vunpack.c.0.s8 %v1581
        %v1583 = vperm.slane %v1579, %v1582
        %v1584 = vrot.slane %v1574, 4
        %v1585 = vsel %vm898, %v1584, %v1572
        %v1587 = vunpack.c.l.s4 1983009808
        %v1588 = vunpack.c.0.s8 %v1587
        %v1589 = vperm.slane %v1585, %v1588
        %v1590 = vsel %vm898, %v1577, %v1566
        %v1592 = vunpack.c.l.s4 1983009808
        %v1593 = vunpack.c.0.s8 %v1592
        %v1594 = vperm.slane %v1590, %v1593
        %v1595 = vrot.slane %v1578, 4
        %v1596 = vsel %vm898, %v1595, %v1576
        %v1598 = vunpack.c.l.s4 1983009808
        %v1599 = vunpack.c.0.s8 %v1598
        %v1600 = vperm.slane %v1596, %v1599
        %v1601 = vrot.slane %v1589, 4
        %v1602 = vsel %vm898, %v1601, %v1583
        %v1603 = vrot.slane %v1583, 4
        %v1604 = vsel %vm898, %v1589, %v1603
        %v1606 = vunpack.c.l.s4 1934713408
        %v1607 = vunpack.c.0.s8 %v1606
        %v1608 = vperm.slane %v1602, %v1607
        %v1610 = vunpack.c.l.s4 1934713408
        %v1611 = vunpack.c.0.s8 %v1610
        %v1612 = vperm.slane %v1604, %v1611
        %v1613 = vrot.slane %v1600, 4
        %v1614 = vsel %vm898, %v1613, %v1594
        %v1615 = vrot.slane %v1594, 4
        %v1616 = vsel %vm898, %v1600, %v1615
        %v1618 = vunpack.c.l.s4 1934713408
        %v1619 = vunpack.c.0.s8 %v1618
        %v1620 = vperm.slane %v1614, %v1619
        %v1622 = vunpack.c.l.s4 1934713408
        %v1623 = vunpack.c.0.s8 %v1622
        %v1624 = vperm.slane %v1616, %v1623
        %v1625 = vrot.slane %v1620, 4
        %v1626 = vsel %vm898, %v1625, %v1608
        %v1627 = vrot.slane %v1608, 4
        %v1628 = vsel %vm898, %v1620, %v1627
        %v1629 = vrot.slane %v1624, 4
        %v1630 = vsel %vm898, %v1629, %v1612
        %v1631 = vrot.slane %v1612, 4
        %v1632 = vsel %vm898, %v1624, %v1631
        %1634 = vrot.lane.b32.xlu0 %v1628, 8
        %v1635 = vpop.permute.xlu0 %1634
        %1638 = vrot.lane.b32.xlu0 %v1630, 16
        %v1639 = vpop.permute.xlu0 %1638
        %1642 = vrot.lane.b32.xlu0 %v1632, 24
        %v1643 = vpop.permute.xlu0 %1642
        %v1645 = vsel %vm1264, %v1626, %v1635
        %vm1646 = vcmask 130048
        %v1647 = vsel %vm1646, %v1645, %v1639
        %vm1648 = vcmask 195584
        %v1649 = vsel %vm1648, %v1647, %v1643
        %1651 = vrot.lane.b32.xlu0 %v885, 120
        %v1652 = vpop.permute.xlu0 %1651
        %1654 = vrot.lane.b32.xlu0 %v885, 112
        %v1655 = vpop.permute.xlu0 %1654
        %1657 = vrot.lane.b32.xlu0 %v885, 104
        %v1658 = vpop.permute.xlu0 %1657
        %v1660 = vrot.slane %v1655, 4
        %v1661 = vsel %vm898, %v1660, %v885
        %v1662 = vrot.slane %v885, 4
        %v1663 = vsel %vm898, %v1655, %v1662
        %v1665 = vunpack.c.l.s4 1983009808
        %v1666 = vunpack.c.0.s8 %v1665
        %v1667 = vperm.slane %v1661, %v1666
        %v1669 = vunpack.c.l.s4 1983009808
        %v1670 = vunpack.c.0.s8 %v1669
        %v1671 = vperm.slane %v1663, %v1670
        %v1672 = vrot.slane %v1658, 4
        %v1673 = vsel %vm898, %v1672, %v1652
        %v1674 = vrot.slane %v1652, 4
        %v1675 = vsel %vm898, %v1658, %v1674
        %v1677 = vunpack.c.l.s4 1983009808
        %v1678 = vunpack.c.0.s8 %v1677
        %v1679 = vperm.slane %v1673, %v1678
        %v1681 = vunpack.c.l.s4 1983009808
        %v1682 = vunpack.c.0.s8 %v1681
        %v1683 = vperm.slane %v1675, %v1682
        %v1684 = vrot.slane %v1679, 4
        %v1685 = vsel %vm898, %v1684, %v1667
        %v1686 = vrot.slane %v1667, 4
        %v1687 = vsel %vm898, %v1679, %v1686
        %v1689 = vunpack.c.l.s4 1934713408
        %v1690 = vunpack.c.0.s8 %v1689
        %v1691 = vperm.slane %v1685, %v1690
        %v1693 = vunpack.c.l.s4 1934713408
        %v1694 = vunpack.c.0.s8 %v1693
        %v1695 = vperm.slane %v1687, %v1694
        %v1696 = vrot.slane %v1683, 4
        %v1697 = vsel %vm898, %v1696, %v1671
        %v1698 = vrot.slane %v1671, 4
        %v1699 = vsel %vm898, %v1683, %v1698
        %v1701 = vunpack.c.l.s4 1934713408
        %v1702 = vunpack.c.0.s8 %v1701
        %v1703 = vperm.slane %v1697, %v1702
        %v1705 = vunpack.c.l.s4 1934713408
        %v1706 = vunpack.c.0.s8 %v1705
        %v1707 = vperm.slane %v1699, %v1706
        %v1708 = vrot.slane %v1691, 4
        %v1709 = vsel %vm898, 0.0, %v1708
        %v1710 = vrot.slane %v1695, 4
        %v1711 = vsel %vm898, 0.0, %v1710
        %v1712 = vrot.slane %v1703, 4
        %v1713 = vsel %vm898, 0.0, %v1712
        %v1714 = vrot.slane %v1707, 4
        %v1715 = vsel %vm898, 0.0, %v1714
        %v1716 = vsel %vm898, %v1710, %v1691
        %v1718 = vunpack.c.l.s4 1983009808
        %v1719 = vunpack.c.0.s8 %v1718
        %v1720 = vperm.slane %v1716, %v1719
        %v1721 = vrot.slane %v1711, 4
        %v1722 = vsel %vm898, %v1721, %v1709
        %v1724 = vunpack.c.l.s4 1983009808
        %v1725 = vunpack.c.0.s8 %v1724
        %v1726 = vperm.slane %v1722, %v1725
        %v1727 = vsel %vm898, %v1714, %v1703
        %v1729 = vunpack.c.l.s4 1983009808
        %v1730 = vunpack.c.0.s8 %v1729
        %v1731 = vperm.slane %v1727, %v1730
        %v1732 = vrot.slane %v1715, 4
        %v1733 = vsel %vm898, %v1732, %v1713
        %v1735 = vunpack.c.l.s4 1983009808
        %v1736 = vunpack.c.0.s8 %v1735
        %v1737 = vperm.slane %v1733, %v1736
        %v1738 = vrot.slane %v1726, 4
        %v1739 = vsel %vm898, %v1738, %v1720
        %v1740 = vrot.slane %v1720, 4
        %v1741 = vsel %vm898, %v1726, %v1740
        %v1743 = vunpack.c.l.s4 1934713408
        %v1744 = vunpack.c.0.s8 %v1743
        %v1745 = vperm.slane %v1739, %v1744
        %v1747 = vunpack.c.l.s4 1934713408
        %v1748 = vunpack.c.0.s8 %v1747
        %v1749 = vperm.slane %v1741, %v1748
        %v1750 = vrot.slane %v1737, 4
        %v1751 = vsel %vm898, %v1750, %v1731
        %v1752 = vrot.slane %v1731, 4
        %v1753 = vsel %vm898, %v1737, %v1752
        %v1755 = vunpack.c.l.s4 1934713408
        %v1756 = vunpack.c.0.s8 %v1755
        %v1757 = vperm.slane %v1751, %v1756
        %v1759 = vunpack.c.l.s4 1934713408
        %v1760 = vunpack.c.0.s8 %v1759
        %v1761 = vperm.slane %v1753, %v1760
        %v1762 = vrot.slane %v1757, 4
        %v1763 = vsel %vm898, %v1762, %v1745
        %v1764 = vrot.slane %v1745, 4
        %v1765 = vsel %vm898, %v1757, %v1764
        %v1766 = vrot.slane %v1761, 4
        %v1767 = vsel %vm898, %v1766, %v1749
        %v1768 = vrot.slane %v1749, 4
        %v1769 = vsel %vm898, %v1761, %v1768
        %v1770 = vpack.c.bf16 %v1763, %v1763
        %v1771 = vpack.c.bf16 %v1765, %v1765
        %v1772 = vpack.c.bf16 %v1767, %v1767
        %v1773 = vpack.c.bf16 %v1769, %v1769
        %1774 = vrot.lane.b32.xlu0 %v885, 96
        %v1775 = vpop.permute.xlu0 %1774
        %1776 = vrot.lane.b32.xlu0 %v1652, 96
        %v1777 = vpop.permute.xlu0 %1776
        %1778 = vrot.lane.b32.xlu0 %v1655, 96
        %v1779 = vpop.permute.xlu0 %1778
        %1780 = vrot.lane.b32.xlu0 %v1658, 96
        %v1781 = vpop.permute.xlu0 %1780
        %v1786 = vrot.slane %v1779, 4
        %v1787 = vsel %vm898, %v1786, %v1775
        %v1788 = vrot.slane %v1775, 4
        %v1789 = vsel %vm898, %v1779, %v1788
        %v1791 = vunpack.c.l.s4 1983009808
        %v1792 = vunpack.c.0.s8 %v1791
        %v1793 = vperm.slane %v1787, %v1792
        %v1795 = vunpack.c.l.s4 1983009808
        %v1796 = vunpack.c.0.s8 %v1795
        %v1797 = vperm.slane %v1789, %v1796
        %v1798 = vrot.slane %v1781, 4
        %v1799 = vsel %vm898, %v1798, %v1777
        %v1800 = vrot.slane %v1777, 4
        %v1801 = vsel %vm898, %v1781, %v1800
        %v1803 = vunpack.c.l.s4 1983009808
        %v1804 = vunpack.c.0.s8 %v1803
        %v1805 = vperm.slane %v1799, %v1804
        %v1807 = vunpack.c.l.s4 1983009808
        %v1808 = vunpack.c.0.s8 %v1807
        %v1809 = vperm.slane %v1801, %v1808
        %v1810 = vrot.slane %v1805, 4
        %v1811 = vsel %vm898, %v1810, %v1793
        %v1812 = vrot.slane %v1793, 4
        %v1813 = vsel %vm898, %v1805, %v1812
        %v1815 = vunpack.c.l.s4 1934713408
        %v1816 = vunpack.c.0.s8 %v1815
        %v1817 = vperm.slane %v1811, %v1816
        %v1819 = vunpack.c.l.s4 1934713408
        %v1820 = vunpack.c.0.s8 %v1819
        %v1821 = vperm.slane %v1813, %v1820
        %v1822 = vrot.slane %v1809, 4
        %v1823 = vsel %vm898, %v1822, %v1797
        %v1824 = vrot.slane %v1797, 4
        %v1825 = vsel %vm898, %v1809, %v1824
        %v1827 = vunpack.c.l.s4 1934713408
        %v1828 = vunpack.c.0.s8 %v1827
        %v1829 = vperm.slane %v1823, %v1828
        %v1831 = vunpack.c.l.s4 1934713408
        %v1832 = vunpack.c.0.s8 %v1831
        %v1833 = vperm.slane %v1825, %v1832
        %v1834 = vrot.slane %v1817, 4
        %v1835 = vsel %vm898, 0.0, %v1834
        %v1836 = vrot.slane %v1821, 4
        %v1837 = vsel %vm898, 0.0, %v1836
        %v1838 = vrot.slane %v1829, 4
        %v1839 = vsel %vm898, 0.0, %v1838
        %v1840 = vrot.slane %v1833, 4
        %v1841 = vsel %vm898, 0.0, %v1840
        %v1842 = vsel %vm898, %v1836, %v1817
        %v1844 = vunpack.c.l.s4 1983009808
        %v1845 = vunpack.c.0.s8 %v1844
        %v1846 = vperm.slane %v1842, %v1845
        %v1847 = vrot.slane %v1837, 4
        %v1848 = vsel %vm898, %v1847, %v1835
        %v1850 = vunpack.c.l.s4 1983009808
        %v1851 = vunpack.c.0.s8 %v1850
        %v1852 = vperm.slane %v1848, %v1851
        %v1853 = vsel %vm898, %v1840, %v1829
        %v1855 = vunpack.c.l.s4 1983009808
        %v1856 = vunpack.c.0.s8 %v1855
        %v1857 = vperm.slane %v1853, %v1856
        %v1858 = vrot.slane %v1841, 4
        %v1859 = vsel %vm898, %v1858, %v1839
        %v1861 = vunpack.c.l.s4 1983009808
        %v1862 = vunpack.c.0.s8 %v1861
        %v1863 = vperm.slane %v1859, %v1862
        %v1864 = vrot.slane %v1852, 4
        %v1865 = vsel %vm898, %v1864, %v1846
        %v1866 = vrot.slane %v1846, 4
        %v1867 = vsel %vm898, %v1852, %v1866
        %v1869 = vunpack.c.l.s4 1934713408
        %v1870 = vunpack.c.0.s8 %v1869
        %v1871 = vperm.slane %v1865, %v1870
        %v1873 = vunpack.c.l.s4 1934713408
        %v1874 = vunpack.c.0.s8 %v1873
        %v1875 = vperm.slane %v1867, %v1874
        %v1876 = vrot.slane %v1863, 4
        %v1877 = vsel %vm898, %v1876, %v1857
        %v1878 = vrot.slane %v1857, 4
        %v1879 = vsel %vm898, %v1863, %v1878
        %v1881 = vunpack.c.l.s4 1934713408
        %v1882 = vunpack.c.0.s8 %v1881
        %v1883 = vperm.slane %v1877, %v1882
        %v1885 = vunpack.c.l.s4 1934713408
        %v1886 = vunpack.c.0.s8 %v1885
        %v1887 = vperm.slane %v1879, %v1886
        %v1888 = vrot.slane %v1883, 4
        %v1889 = vsel %vm898, %v1888, %v1871
        %v1890 = vrot.slane %v1871, 4
        %v1891 = vsel %vm898, %v1883, %v1890
        %v1892 = vrot.slane %v1887, 4
        %v1893 = vsel %vm898, %v1892, %v1875
        %v1894 = vrot.slane %v1875, 4
        %v1895 = vsel %vm898, %v1887, %v1894
        %v1896 = vpack.c.bf16 %v1889, %v1889
        %v1897 = vpack.c.bf16 %v1891, %v1891
        %v1898 = vpack.c.bf16 %v1893, %v1893
        %v1899 = vpack.c.bf16 %v1895, %v1895
        %1900 = vrot.lane.b32.xlu0 %v885, 64
        %v1901 = vpop.permute.xlu0 %1900
        %1902 = vrot.lane.b32.xlu0 %v1652, 64
        %v1903 = vpop.permute.xlu0 %1902
        %1904 = vrot.lane.b32.xlu0 %v1655, 64
        %v1905 = vpop.permute.xlu0 %1904
        %1906 = vrot.lane.b32.xlu0 %v1658, 64
        %v1907 = vpop.permute.xlu0 %1906
        %v1912 = vrot.slane %v1905, 4
        %v1913 = vsel %vm898, %v1912, %v1901
        %v1914 = vrot.slane %v1901, 4
        %v1915 = vsel %vm898, %v1905, %v1914
        %v1917 = vunpack.c.l.s4 1983009808
        %v1918 = vunpack.c.0.s8 %v1917
        %v1919 = vperm.slane %v1913, %v1918
        %v1921 = vunpack.c.l.s4 1983009808
        %v1922 = vunpack.c.0.s8 %v1921
        %v1923 = vperm.slane %v1915, %v1922
        %v1924 = vrot.slane %v1907, 4
        %v1925 = vsel %vm898, %v1924, %v1903
        %v1926 = vrot.slane %v1903, 4
        %v1927 = vsel %vm898, %v1907, %v1926
        %v1929 = vunpack.c.l.s4 1983009808
        %v1930 = vunpack.c.0.s8 %v1929
        %v1931 = vperm.slane %v1925, %v1930
        %v1933 = vunpack.c.l.s4 1983009808
        %v1934 = vunpack.c.0.s8 %v1933
        %v1935 = vperm.slane %v1927, %v1934
        %v1936 = vrot.slane %v1931, 4
        %v1937 = vsel %vm898, %v1936, %v1919
        %v1938 = vrot.slane %v1919, 4
        %v1939 = vsel %vm898, %v1931, %v1938
        %v1941 = vunpack.c.l.s4 1934713408
        %v1942 = vunpack.c.0.s8 %v1941
        %v1943 = vperm.slane %v1937, %v1942
        %v1945 = vunpack.c.l.s4 1934713408
        %v1946 = vunpack.c.0.s8 %v1945
        %v1947 = vperm.slane %v1939, %v1946
        %v1948 = vrot.slane %v1935, 4
        %v1949 = vsel %vm898, %v1948, %v1923
        %v1950 = vrot.slane %v1923, 4
        %v1951 = vsel %vm898, %v1935, %v1950
        %v1953 = vunpack.c.l.s4 1934713408
        %v1954 = vunpack.c.0.s8 %v1953
        %v1955 = vperm.slane %v1949, %v1954
        %v1957 = vunpack.c.l.s4 1934713408
        %v1958 = vunpack.c.0.s8 %v1957
        %v1959 = vperm.slane %v1951, %v1958
        %v1960 = vrot.slane %v1943, 4
        %v1961 = vsel %vm898, 0.0, %v1960
        %v1962 = vrot.slane %v1947, 4
        %v1963 = vsel %vm898, 0.0, %v1962
        %v1964 = vrot.slane %v1955, 4
        %v1965 = vsel %vm898, 0.0, %v1964
        %v1966 = vrot.slane %v1959, 4
        %v1967 = vsel %vm898, 0.0, %v1966
        %v1968 = vsel %vm898, %v1962, %v1943
        %v1970 = vunpack.c.l.s4 1983009808
        %v1971 = vunpack.c.0.s8 %v1970
        %v1972 = vperm.slane %v1968, %v1971
        %v1973 = vrot.slane %v1963, 4
        %v1974 = vsel %vm898, %v1973, %v1961
        %v1976 = vunpack.c.l.s4 1983009808
        %v1977 = vunpack.c.0.s8 %v1976
        %v1978 = vperm.slane %v1974, %v1977
        %v1979 = vsel %vm898, %v1966, %v1955
        %v1981 = vunpack.c.l.s4 1983009808
        %v1982 = vunpack.c.0.s8 %v1981
        %v1983 = vperm.slane %v1979, %v1982
        %v1984 = vrot.slane %v1967, 4
        %v1985 = vsel %vm898, %v1984, %v1965
        %v1987 = vunpack.c.l.s4 1983009808
        %v1988 = vunpack.c.0.s8 %v1987
        %v1989 = vperm.slane %v1985, %v1988
        %v1990 = vrot.slane %v1978, 4
        %v1991 = vsel %vm898, %v1990, %v1972
        %v1992 = vrot.slane %v1972, 4
        %v1993 = vsel %vm898, %v1978, %v1992
        %v1995 = vunpack.c.l.s4 1934713408
        %v1996 = vunpack.c.0.s8 %v1995
        %v1997 = vperm.slane %v1991, %v1996
        %v1999 = vunpack.c.l.s4 1934713408
        %v2000 = vunpack.c.0.s8 %v1999
        %v2001 = vperm.slane %v1993, %v2000
        %v2002 = vrot.slane %v1989, 4
        %v2003 = vsel %vm898, %v2002, %v1983
        %v2004 = vrot.slane %v1983, 4
        %v2005 = vsel %vm898, %v1989, %v2004
        %v2007 = vunpack.c.l.s4 1934713408
        %v2008 = vunpack.c.0.s8 %v2007
        %v2009 = vperm.slane %v2003, %v2008
        %v2011 = vunpack.c.l.s4 1934713408
        %v2012 = vunpack.c.0.s8 %v2011
        %v2013 = vperm.slane %v2005, %v2012
        %v2014 = vrot.slane %v2009, 4
        %v2015 = vsel %vm898, %v2014, %v1997
        %v2016 = vrot.slane %v1997, 4
        %v2017 = vsel %vm898, %v2009, %v2016
        %v2018 = vrot.slane %v2013, 4
        %v2019 = vsel %vm898, %v2018, %v2001
        %v2020 = vrot.slane %v2001, 4
        %v2021 = vsel %vm898, %v2013, %v2020
        %v2022 = vpack.c.bf16 %v2015, %v2015
        %v2023 = vpack.c.bf16 %v2017, %v2017
        %v2024 = vpack.c.bf16 %v2019, %v2019
        %v2025 = vpack.c.bf16 %v2021, %v2021
        %v2027 = vsel %vm1264, %v1770, 0
        %v2030 = vsel %vm1264, %v1896, 0
        %2032 = vmatpush.bf16.xpose.msra.mxu0 0
        %2033 = vmatpush.bf16.xpose.msra.mxu0 0
        %2034 = vmatpush.bf16.xpose.msra.mxu0 0
        %2035 = vmatpush.bf16.xpose.msra.mxu0 0
        %2036 = vmatpush.bf16.xpose.msra.mxu0 0
        %2037 = vmatpush.bf16.xpose.msra.mxu0 0
        %2038 = vmatpush.bf16.xpose.msra.mxu0 0
        %2039 = vmatpush.bf16.xpose.msra.mxu0 %v2030
        %2040 = vmatmul.bf16.gmra.mxu0 %v2027
        %v2041 = vpop.f32.mrf.mxu0
        %v2042 = vadd.f32 0.0, %v2041
        %v2043 = vpop.f32.mrf.mxu0
        %2044 = vdwg.mxu0
        %v2046 = vsel %vm1264, %v1771, 0
        %v2049 = vsel %vm1264, %v1897, 0
        %2051 = vmatpush.bf16.xpose.msra.mxu0 0
        %2052 = vmatpush.bf16.xpose.msra.mxu0 0
        %2053 = vmatpush.bf16.xpose.msra.mxu0 0
        %2054 = vmatpush.bf16.xpose.msra.mxu0 0
        %2055 = vmatpush.bf16.xpose.msra.mxu0 0
        %2056 = vmatpush.bf16.xpose.msra.mxu0 0
        %2057 = vmatpush.bf16.xpose.msra.mxu0 0
        %2058 = vmatpush.bf16.xpose.msra.mxu0 %v2049
        %2059 = vmatmul.bf16.gmra.mxu0 %v2046
        %v2060 = vpop.f32.mrf.mxu0
        %v2061 = vadd.f32 0.0, %v2060
        %v2062 = vpop.f32.mrf.mxu0
        %2063 = vdwg.mxu0
        %v2065 = vsel %vm1264, %v1772, 0
        %v2068 = vsel %vm1264, %v1898, 0
        %2070 = vmatpush.bf16.xpose.msra.mxu0 0
        %2071 = vmatpush.bf16.xpose.msra.mxu0 0
        %2072 = vmatpush.bf16.xpose.msra.mxu0 0
        %2073 = vmatpush.bf16.xpose.msra.mxu0 0
        %2074 = vmatpush.bf16.xpose.msra.mxu0 0
        %2075 = vmatpush.bf16.xpose.msra.mxu0 0
        %2076 = vmatpush.bf16.xpose.msra.mxu0 0
        %2077 = vmatpush.bf16.xpose.msra.mxu0 %v2068
        %2078 = vmatmul.bf16.gmra.mxu0 %v2065
        %v2079 = vpop.f32.mrf.mxu0
        %v2080 = vadd.f32 0.0, %v2079
        %v2081 = vpop.f32.mrf.mxu0
        %2082 = vdwg.mxu0
        %v2084 = vsel %vm1264, %v1773, 0
        %v2087 = vsel %vm1264, %v1899, 0
        %2089 = vmatpush.bf16.xpose.msra.mxu0 0
        %2090 = vmatpush.bf16.xpose.msra.mxu0 0
        %2091 = vmatpush.bf16.xpose.msra.mxu0 0
        %2092 = vmatpush.bf16.xpose.msra.mxu0 0
        %2093 = vmatpush.bf16.xpose.msra.mxu0 0
        %2094 = vmatpush.bf16.xpose.msra.mxu0 0
        %2095 = vmatpush.bf16.xpose.msra.mxu0 0
        %2096 = vmatpush.bf16.xpose.msra.mxu0 %v2087
        %2097 = vmatmul.bf16.gmra.mxu0 %v2084
        %v2098 = vpop.f32.mrf.mxu0
        %v2099 = vadd.f32 0.0, %v2098
        %v2100 = vpop.f32.mrf.mxu0
        %2101 = vdwg.mxu0
        %v2102 = vsel %vm1264, %v2042, -inf
        %2103 = vmax.xlane.f32.xlu0 %v2102
        %v2104 = vpop.xlane.xlu0 %2103
        %v2105 = vsel %vm1264, %v2061, -inf
        %2106 = vmax.xlane.f32.xlu0 %v2105
        %v2107 = vpop.xlane.xlu0 %2106
        %v2108 = vsel %vm1264, %v2080, -inf
        %2109 = vmax.xlane.f32.xlu0 %v2108
        %v2110 = vpop.xlane.xlu0 %2109
        %v2111 = vsel %vm1264, %v2099, -inf
        %2112 = vmax.xlane.f32.xlu0 %v2111
        %v2113 = vpop.xlane.xlu0 %2112
        %v2114 = vsub.f32 %v2042, %v2104
        %v2115 = vsub.f32 %v2061, %v2107
        %v2116 = vsub.f32 %v2080, %v2110
        %v2117 = vsub.f32 %v2099, %v2113
        %v2118 = vmul.f32 %v2114, 1.442695
        %v2119 = vpow.pop %v2118
        %v2120 = vmul.f32 %v2115, 1.442695
        %v2121 = vpow.pop %v2120
        %v2122 = vmul.f32 %v2116, 1.442695
        %v2123 = vpow.pop %v2122
        %v2124 = vmul.f32 %v2117, 1.442695
        %v2125 = vpow.pop %v2124
        %v2126 = vsel %vm1264, %v2119, 0.0
        %2127 = vadd.xlane.f32.xlu0 %v2126
        %v2128 = vpop.xlane.xlu0 %2127
        %v2129 = vsel %vm1264, %v2121, 0.0
        %2130 = vadd.xlane.f32.xlu0 %v2129
        %v2131 = vpop.xlane.xlu0 %2130
        %v2132 = vsel %vm1264, %v2123, 0.0
        %2133 = vadd.xlane.f32.xlu0 %v2132
        %v2134 = vpop.xlane.xlu0 %2133
        %v2135 = vsel %vm1264, %v2125, 0.0
        %2136 = vadd.xlane.f32.xlu0 %v2135
        %v2137 = vpop.xlane.xlu0 %2136
        %v2138 = vrcp.pop %v2128
        %v2139 = vmul.f32 %v2128, %v2138
        %v2140 = vsub.f32 1.0, %v2139
        %v2141 = vmul.f32 %v2138, %v2140
        %v2142 = vadd.f32 %v2138, %v2141
        %vm2143 = vweird.f32 %v2128
        %vm2144 = vweird.f32 %v2138
        %vm2145 = vmor %vm2143, %vm2144
        %v2146 = vsel %vm2145, %v2138, %v2142
        %v2147 = vand.u32 2147483647, %v2128
        %vm2148 = vcmp.eq.f32.partialorder %v2147, 8.507059e+37
        %v2149 = vand.u32 %v2128, 2147483648
        %v2150 = vor.u32 1.1754944e-38, %v2149
        %v2151 = vsel %vm2148, %v2150, %v2146
        %v2152 = vrcp.pop %v2131
        %v2153 = vmul.f32 %v2131, %v2152
        %v2154 = vsub.f32 1.0, %v2153
        %v2155 = vmul.f32 %v2152, %v2154
        %v2156 = vadd.f32 %v2152, %v2155
        %vm2157 = vweird.f32 %v2131
        %vm2158 = vweird.f32 %v2152
        %vm2159 = vmor %vm2157, %vm2158
        %v2160 = vsel %vm2159, %v2152, %v2156
        %v2161 = vand.u32 2147483647, %v2131
        %vm2162 = vcmp.eq.f32.partialorder %v2161, 8.507059e+37
        %v2163 = vand.u32 %v2131, 2147483648
        %v2164 = vor.u32 1.1754944e-38, %v2163
        %v2165 = vsel %vm2162, %v2164, %v2160
        %v2166 = vrcp.pop %v2134
        %v2167 = vmul.f32 %v2134, %v2166
        %v2168 = vsub.f32 1.0, %v2167
        %v2169 = vmul.f32 %v2166, %v2168
        %v2170 = vadd.f32 %v2166, %v2169
        %vm2171 = vweird.f32 %v2134
        %vm2172 = vweird.f32 %v2166
        %vm2173 = vmor %vm2171, %vm2172
        %v2174 = vsel %vm2173, %v2166, %v2170
        %v2175 = vand.u32 2147483647, %v2134
        %vm2176 = vcmp.eq.f32.partialorder %v2175, 8.507059e+37
        %v2177 = vand.u32 %v2134, 2147483648
        %v2178 = vor.u32 1.1754944e-38, %v2177
        %v2179 = vsel %vm2176, %v2178, %v2174
        %v2180 = vrcp.pop %v2137
        %v2181 = vmul.f32 %v2137, %v2180
        %v2182 = vsub.f32 1.0, %v2181
        %v2183 = vmul.f32 %v2180, %v2182
        %v2184 = vadd.f32 %v2180, %v2183
        %vm2185 = vweird.f32 %v2137
        %vm2186 = vweird.f32 %v2180
        %vm2187 = vmor %vm2185, %vm2186
        %v2188 = vsel %vm2187, %v2180, %v2184
        %v2189 = vand.u32 2147483647, %v2137
        %vm2190 = vcmp.eq.f32.partialorder %v2189, 8.507059e+37
        %v2191 = vand.u32 %v2137, 2147483648
        %v2192 = vor.u32 1.1754944e-38, %v2191
        %v2193 = vsel %vm2190, %v2192, %v2188
        %v2194 = vmul.f32 %v2119, %v2151
        %v2195 = vmul.f32 %v2121, %v2165
        %v2196 = vmul.f32 %v2123, %v2179
        %v2197 = vmul.f32 %v2125, %v2193
        %v2198 = vpack.c.bf16 %v2194, %v2194
        %v2199 = vpack.c.bf16 %v2195, %v2195
        %v2200 = vpack.c.bf16 %v2196, %v2196
        %v2201 = vpack.c.bf16 %v2197, %v2197
        %s2202 = scalar_lea.vmem %s732, 16 [#allocation11]
        %2203 = vst.msk [vmem:[%s2202] sm:$0xf] %vm1441, %v2198
        %2204 = vst.msk [vmem:[%s2202 + $0x4] sm:$0xf] %vm1441, %v2199
        %2205 = vst.msk [vmem:[%s2202 + $0x8] sm:$0xf] %vm1441, %v2200
        %2206 = vst.msk [vmem:[%s2202 + $0xc] sm:$0xf] %vm1441, %v2201
        %v2208 = vsel %vm1264, %v2198, 0
        %v2211 = vsel %vm1449, %v2022, 0
        %2213 = vmatpush.bf16.msra.mxu0 0
        %2214 = vmatpush.bf16.msra.mxu0 0
        %2215 = vmatpush.bf16.msra.mxu0 0
        %2216 = vmatpush.bf16.msra.mxu0 0
        %2217 = vmatpush.bf16.msra.mxu0 0
        %2218 = vmatpush.bf16.msra.mxu0 0
        %2219 = vmatpush.bf16.msra.mxu0 0
        %2220 = vmatpush.bf16.msra.mxu0 %v2211
        %2221 = vmatmul.bf16.gmra.mxu0 %v2208
        %v2222 = vpop.f32.mrf.mxu0
        %v2223 = vadd.f32 0.0, %v2222
        %v2224 = vpop.f32.mrf.mxu0
        %2225 = vdwg.mxu0
        %v2227 = vsel %vm1264, %v2199, 0
        %v2230 = vsel %vm1449, %v2023, 0
        %2232 = vmatpush.bf16.msra.mxu0 0
        %2233 = vmatpush.bf16.msra.mxu0 0
        %2234 = vmatpush.bf16.msra.mxu0 0
        %2235 = vmatpush.bf16.msra.mxu0 0
        %2236 = vmatpush.bf16.msra.mxu0 0
        %2237 = vmatpush.bf16.msra.mxu0 0
        %2238 = vmatpush.bf16.msra.mxu0 0
        %2239 = vmatpush.bf16.msra.mxu0 %v2230
        %2240 = vmatmul.bf16.gmra.mxu0 %v2227
        %v2241 = vpop.f32.mrf.mxu0
        %v2242 = vadd.f32 0.0, %v2241
        %v2243 = vpop.f32.mrf.mxu0
        %2244 = vdwg.mxu0
        %v2246 = vsel %vm1264, %v2200, 0
        %v2249 = vsel %vm1449, %v2024, 0
        %2251 = vmatpush.bf16.msra.mxu0 0
        %2252 = vmatpush.bf16.msra.mxu0 0
        %2253 = vmatpush.bf16.msra.mxu0 0
        %2254 = vmatpush.bf16.msra.mxu0 0
        %2255 = vmatpush.bf16.msra.mxu0 0
        %2256 = vmatpush.bf16.msra.mxu0 0
        %2257 = vmatpush.bf16.msra.mxu0 0
        %2258 = vmatpush.bf16.msra.mxu0 %v2249
        %2259 = vmatmul.bf16.gmra.mxu0 %v2246
        %v2260 = vpop.f32.mrf.mxu0
        %v2261 = vadd.f32 0.0, %v2260
        %v2262 = vpop.f32.mrf.mxu0
        %2263 = vdwg.mxu0
        %v2265 = vsel %vm1264, %v2201, 0
        %v2268 = vsel %vm1449, %v2025, 0
        %2270 = vmatpush.bf16.msra.mxu0 0
        %2271 = vmatpush.bf16.msra.mxu0 0
        %2272 = vmatpush.bf16.msra.mxu0 0
        %2273 = vmatpush.bf16.msra.mxu0 0
        %2274 = vmatpush.bf16.msra.mxu0 0
        %2275 = vmatpush.bf16.msra.mxu0 0
        %2276 = vmatpush.bf16.msra.mxu0 0
        %2277 = vmatpush.bf16.msra.mxu0 %v2268
        %2278 = vmatmul.bf16.gmra.mxu0 %v2265
        %v2279 = vpop.f32.mrf.mxu0
        %v2280 = vadd.f32 0.0, %v2279
        %v2281 = vpop.f32.mrf.mxu0
        %2282 = vdwg.mxu0
        %v2283 = vrot.slane %v2261, 4
        %v2284 = vsel %vm898, %v2283, %v2223
        %v2285 = vrot.slane %v2223, 4
        %v2286 = vsel %vm898, %v2261, %v2285
        %v2288 = vunpack.c.l.s4 1983009808
        %v2289 = vunpack.c.0.s8 %v2288
        %v2290 = vperm.slane %v2284, %v2289
        %v2292 = vunpack.c.l.s4 1983009808
        %v2293 = vunpack.c.0.s8 %v2292
        %v2294 = vperm.slane %v2286, %v2293
        %v2295 = vrot.slane %v2280, 4
        %v2296 = vsel %vm898, %v2295, %v2242
        %v2297 = vrot.slane %v2242, 4
        %v2298 = vsel %vm898, %v2280, %v2297
        %v2300 = vunpack.c.l.s4 1983009808
        %v2301 = vunpack.c.0.s8 %v2300
        %v2302 = vperm.slane %v2296, %v2301
        %v2304 = vunpack.c.l.s4 1983009808
        %v2305 = vunpack.c.0.s8 %v2304
        %v2306 = vperm.slane %v2298, %v2305
        %v2307 = vrot.slane %v2302, 4
        %v2308 = vsel %vm898, %v2307, %v2290
        %v2309 = vrot.slane %v2290, 4
        %v2310 = vsel %vm898, %v2302, %v2309
        %v2312 = vunpack.c.l.s4 1934713408
        %v2313 = vunpack.c.0.s8 %v2312
        %v2314 = vperm.slane %v2308, %v2313
        %v2316 = vunpack.c.l.s4 1934713408
        %v2317 = vunpack.c.0.s8 %v2316
        %v2318 = vperm.slane %v2310, %v2317
        %v2319 = vrot.slane %v2306, 4
        %v2320 = vsel %vm898, %v2319, %v2294
        %v2321 = vrot.slane %v2294, 4
        %v2322 = vsel %vm898, %v2306, %v2321
        %v2324 = vunpack.c.l.s4 1934713408
        %v2325 = vunpack.c.0.s8 %v2324
        %v2326 = vperm.slane %v2320, %v2325
        %v2328 = vunpack.c.l.s4 1934713408
        %v2329 = vunpack.c.0.s8 %v2328
        %v2330 = vperm.slane %v2322, %v2329
        %v2331 = vrot.slane %v2314, 4
        %v2332 = vsel %vm898, 0.0, %v2331
        %v2333 = vrot.slane %v2318, 4
        %v2334 = vsel %vm898, 0.0, %v2333
        %v2335 = vrot.slane %v2326, 4
        %v2336 = vsel %vm898, 0.0, %v2335
        %v2337 = vrot.slane %v2330, 4
        %v2338 = vsel %vm898, 0.0, %v2337
        %v2339 = vsel %vm898, %v2333, %v2314
        %v2341 = vunpack.c.l.s4 1983009808
        %v2342 = vunpack.c.0.s8 %v2341
        %v2343 = vperm.slane %v2339, %v2342
        %v2344 = vrot.slane %v2334, 4
        %v2345 = vsel %vm898, %v2344, %v2332
        %v2347 = vunpack.c.l.s4 1983009808
        %v2348 = vunpack.c.0.s8 %v2347
        %v2349 = vperm.slane %v2345, %v2348
        %v2350 = vsel %vm898, %v2337, %v2326
        %v2352 = vunpack.c.l.s4 1983009808
        %v2353 = vunpack.c.0.s8 %v2352
        %v2354 = vperm.slane %v2350, %v2353
        %v2355 = vrot.slane %v2338, 4
        %v2356 = vsel %vm898, %v2355, %v2336
        %v2358 = vunpack.c.l.s4 1983009808
        %v2359 = vunpack.c.0.s8 %v2358
        %v2360 = vperm.slane %v2356, %v2359
        %v2361 = vrot.slane %v2349, 4
        %v2362 = vsel %vm898, %v2361, %v2343
        %v2363 = vrot.slane %v2343, 4
        %v2364 = vsel %vm898, %v2349, %v2363
        %v2366 = vunpack.c.l.s4 1934713408
        %v2367 = vunpack.c.0.s8 %v2366
        %v2368 = vperm.slane %v2362, %v2367
        %v2370 = vunpack.c.l.s4 1934713408
        %v2371 = vunpack.c.0.s8 %v2370
        %v2372 = vperm.slane %v2364, %v2371
        %v2373 = vrot.slane %v2360, 4
        %v2374 = vsel %vm898, %v2373, %v2354
        %v2375 = vrot.slane %v2354, 4
        %v2376 = vsel %vm898, %v2360, %v2375
        %v2378 = vunpack.c.l.s4 1934713408
        %v2379 = vunpack.c.0.s8 %v2378
        %v2380 = vperm.slane %v2374, %v2379
        %v2382 = vunpack.c.l.s4 1934713408
        %v2383 = vunpack.c.0.s8 %v2382
        %v2384 = vperm.slane %v2376, %v2383
        %v2385 = vrot.slane %v2380, 4
        %v2386 = vsel %vm898, %v2385, %v2368
        %v2387 = vrot.slane %v2368, 4
        %v2388 = vsel %vm898, %v2380, %v2387
        %v2389 = vrot.slane %v2384, 4
        %v2390 = vsel %vm898, %v2389, %v2372
        %v2391 = vrot.slane %v2372, 4
        %v2392 = vsel %vm898, %v2384, %v2391
        %2394 = vrot.lane.b32.xlu0 %v2388, 8
        %v2395 = vpop.permute.xlu0 %2394
        %2398 = vrot.lane.b32.xlu0 %v2390, 16
        %v2399 = vpop.permute.xlu0 %2398
        %2402 = vrot.lane.b32.xlu0 %v2392, 24
        %v2403 = vpop.permute.xlu0 %2402
        %v2405 = vsel %vm1264, %v2386, %v2395
        %v2406 = vsel %vm1646, %v2405, %v2399
        %v2407 = vsel %vm1648, %v2406, %v2403
        %v2408 = vpack.c.bf16 %v2407, %v1649
        %v2409 = vld [vmem:[%s748] sm:$0xf]
        %v2410 = vld [vmem:[%s748 + $0x4] sm:$0xf]
        %v2411 = vld [vmem:[%s748 + $0x8] sm:$0xf]
        %v2412 = vld [vmem:[%s748 + $0xc] sm:$0xf]
        %v2413 = vld [vmem:[%s751] sm:$0x1]
        %v2415 = vperm.slane %v2413, 0
        %v2421 = vunpack.c.l.b16 %v2409
        %v2422 = vunpack.c.l.b16 %v2410
        %v2423 = vunpack.c.l.b16 %v2411
        %v2424 = vunpack.c.l.b16 %v2412
        %v2425 = vpack.c.b16 %v2422, %v2421
        %v2426 = vpack.c.b16 %v2424, %v2423
        %v2430 = vsel %vm787, %v2408, 0
        %2432 = vmatpush.bf16.msra.mxu0 0
        %2433 = vmatpush.bf16.msra.mxu0 0
        %2434 = vmatpush.bf16.msra.mxu0 0
        %2435 = vmatpush.bf16.msra.mxu0 0
        %2436 = vmatpush.bf16.msra.mxu0 0
        %2437 = vmatpush.bf16.msra.mxu0 0
        %2438 = vmatpush.bf16.msra.mxu0 %v2426
        %2439 = vmatpush.bf16.msra.mxu0 %v2425
        %2440 = vmatmul.bf16.gmra.mxu0 %v2430
        %v2441 = vpop.f32.mrf.mxu0
        %v2442 = vadd.f32 %v2415, %v2441
        %v2443 = vpop.f32.mrf.mxu0
        %v2444 = vadd.f32 %v2415, %v2443
        %2445 = vdwg.mxu0
        %v2446 = vadd.f32 %v847, %v2442
        %v2447 = vadd.f32 %v848, %v2444
        %v2448 = vpack.c.bf16 %v2447, %v2446
        %v2449 = vld [vmem:[%s617] sm:$0xf]
        %v2450 = vld [vmem:[%s617 + $0x4] sm:$0xf]
        %v2451 = vld [vmem:[%s617 + $0x8] sm:$0xf]
        %v2452 = vld [vmem:[%s617 + $0xc] sm:$0xf]
        %v2453 = vld [vmem:[%s754] sm:$0x1]
        %v2455 = vperm.slane %v2453, 0
        %v2461 = vunpack.c.l.b16 %v2449
        %v2462 = vunpack.c.l.b16 %v2450
        %v2463 = vunpack.c.l.b16 %v2451
        %v2464 = vunpack.c.l.b16 %v2452
        %v2465 = vpack.c.b16 %v2462, %v2461
        %v2466 = vpack.c.b16 %v2464, %v2463
        %v2470 = vsel %vm787, %v2448, 0
        %2472 = vmatpush.bf16.msra.mxu0 0
        %2473 = vmatpush.bf16.msra.mxu0 0
        %2474 = vmatpush.bf16.msra.mxu0 0
        %2475 = vmatpush.bf16.msra.mxu0 0
        %2476 = vmatpush.bf16.msra.mxu0 0
        %2477 = vmatpush.bf16.msra.mxu0 0
        %2478 = vmatpush.bf16.msra.mxu0 %v2466
        %2479 = vmatpush.bf16.msra.mxu0 %v2465
        %2480 = vmatmul.bf16.gmra.mxu0 %v2470
        %v2481 = vpop.f32.mrf.mxu0
        %v2482 = vadd.f32 %v2455, %v2481
        %v2483 = vpop.f32.mrf.mxu0
        %v2484 = vadd.f32 %v2455, %v2483
        %2485 = vdwg.mxu0
        %v2486 = vmax.f32 %v2482, 0.0
        %v2487 = vmax.f32 %v2484, 0.0
        %v2488 = vpack.c.bf16 %v2487, %v2486
        %v2489 = vld [vmem:[%s759] sm:$0xf]
        %v2490 = vld [vmem:[%s759 + $0x4] sm:$0xf]
        %v2491 = vld [vmem:[%s759 + $0x8] sm:$0xf]
        %v2492 = vld [vmem:[%s759 + $0xc] sm:$0xf]
        %v2493 = vld [vmem:[%s759 + $0x10] sm:$0xf]
        %v2494 = vld [vmem:[%s759 + $0x14] sm:$0xf]
        %v2495 = vld [vmem:[%s759 + $0x18] sm:$0xf]
        %v2496 = vld [vmem:[%s759 + $0x1c] sm:$0xf]
        %v2497 = vld [vmem:[%s762] sm:$0x1]
        %v2499 = vperm.slane %v2497, 0
        %v2509 = vunpack.c.l.b16 %v2489
        %v2510 = vunpack.c.l.b16 %v2490
        %v2511 = vunpack.c.l.b16 %v2491
        %v2512 = vunpack.c.l.b16 %v2492
        %v2513 = vunpack.c.l.b16 %v2493
        %v2514 = vunpack.c.l.b16 %v2494
        %v2515 = vunpack.c.l.b16 %v2495
        %v2516 = vunpack.c.l.b16 %v2496
        %v2517 = vpack.c.b16 %v2510, %v2509
        %v2518 = vpack.c.b16 %v2512, %v2511
        %v2519 = vpack.c.b16 %v2514, %v2513
        %v2520 = vpack.c.b16 %v2516, %v2515
        %vm2525 = vcmask 523264
        %v2527 = vsel %vm2525, %v2488, 0
        %2529 = vmatpush.bf16.msra.mxu0 0
        %2530 = vmatpush.bf16.msra.mxu0 0
        %2531 = vmatpush.bf16.msra.mxu0 0
        %2532 = vmatpush.bf16.msra.mxu0 0
        %2533 = vmatpush.bf16.msra.mxu0 %v2520
        %2534 = vmatpush.bf16.msra.mxu0 %v2519
        %2535 = vmatpush.bf16.msra.mxu0 %v2518
        %2536 = vmatpush.bf16.msra.mxu0 %v2517
        %2537 = vmatmul.bf16.gmra.mxu0 %v2527
        %v2538 = vpop.f32.mrf.mxu0
        %v2539 = vadd.f32 %v2499, %v2538
        %v2540 = vpop.f32.mrf.mxu0
        %v2541 = vadd.f32 %v2499, %v2540
        %2542 = vdwg.mxu0
        %v2543 = vadd.f32 %v2446, %v2539
        %v2544 = vadd.f32 %v2447, %v2541
        %v2545 = vld [vmem:[%s635] sm:$0x1]
        %v2546 = vld [vmem:[%s768] sm:$0x1]
        %v2547 = vsel %vm787, %v2543, 0.0
        %2548 = vadd.xlane.f32.xlu0 %v2547
        %v2549 = vpop.xlane.xlu0 %2548
        %v2550 = vsel %vm787, %v2544, 0.0
        %2551 = vadd.xlane.f32.xlu0 %v2550
        %v2552 = vpop.xlane.xlu0 %2551
        %v2553 = vmul.f32 %v2549, %v800
        %v2554 = vmul.f32 %v2552, %v800
        %v2555 = vsub.f32 %v2543, %v2553
        %v2556 = vsub.f32 %v2544, %v2554
        %v2557 = vmul.f32 %v2555, %v2555
        %v2558 = vmul.f32 %v2556, %v2556
        %v2559 = vsel %vm787, %v2557, 0.0
        %2560 = vadd.xlane.f32.xlu0 %v2559
        %v2561 = vpop.xlane.xlu0 %2560
        %v2562 = vsel %vm787, %v2558, 0.0
        %2563 = vadd.xlane.f32.xlu0 %v2562
        %v2564 = vpop.xlane.xlu0 %2563
        %v2565 = vmul.f32 %v2561, %v800
        %v2566 = vmul.f32 %v2564, %v800
        %v2567 = vadd.f32 %v2565, 1e-05
        %v2568 = vadd.f32 %v2566, 1e-05
        %v2569 = vrsqrt.pop %v2567
        %v2570 = vmul.f32 %v2569, %v2567
        %v2571 = vmul.f32 %v2570, %v2569
        %v2572 = vmul.f32 0.5, %v2571
        %v2573 = vsub.f32 1.5, %v2572
        %v2574 = vmul.f32 %v2569, %v2573
        %vm2575 = vweird.f32 %v2567
        %vm2576 = vweird.f32 %v2569
        %vm2577 = vmor %vm2575, %vm2576
        %v2578 = vsel %vm2577, %v2569, %v2574
        %v2579 = vrsqrt.pop %v2568
        %v2580 = vmul.f32 %v2579, %v2568
        %v2581 = vmul.f32 %v2580, %v2579
        %v2582 = vmul.f32 0.5, %v2581
        %v2583 = vsub.f32 1.5, %v2582
        %v2584 = vmul.f32 %v2579, %v2583
        %vm2585 = vweird.f32 %v2568
        %vm2586 = vweird.f32 %v2579
        %vm2587 = vmor %vm2585, %vm2586
        %v2588 = vsel %vm2587, %v2579, %v2584
        %v2589 = vmul.f32 %v2555, %v2578
        %v2590 = vmul.f32 %v2556, %v2588
        %v2592 = vperm.slane %v2545, 0
        %v2594 = vmul.f32 %v2589, %v2592
        %v2595 = vmul.f32 %v2590, %v2592
        %v2597 = vperm.slane %v2546, 0
        %v2599 = vadd.f32 %v2594, %v2597
        %v2600 = vadd.f32 %v2595, %v2597
        %2601 = vst.msk [vmem:[%s725] sm:$0xff] %vm787, %v2599
        %2602 = vst.msk [vmem:[%s725 + $0x8] sm:$0xff] %vm787, %v2600
        %s2603 = sand.u32 %s399, 1
        %s2604 = scalar_lea.sflag [#allocation4], %s2603
        %s2605 = sand.u32 %s399, 1
        %s2606 = smul.addr %s2605, 16
        %s2607 = scalar_lea.vmem [#allocation10], %s2606
        %s2608 = sand.u32 %s429, 1
        %s2609 = scalar_lea.sflag [#allocation12], %s2608
        %s2610 = sand.u32 %s429, 1
        %s2611 = smul.addr %s2610, 32
        %s2612 = scalar_lea.vmem [#allocation11], %s2611
        // Predicated region
        $region93: #{tpu_custom_call.1} parent=71 // pred_check
          %p2613 = pneg %p409
        $region94: #{tpu_custom_call.1} parent=71 // pred_check_branch
          %2615 = sbr.rel (%p2613) target = $region96
        $region95: #{tpu_custom_call.1} parent=71 // pred_region
          %s2616 = smul.u32 2, %s45
          %2618 = vsyncadd %s2604, 0
          %s2619 = smul.addr %s2616, 8
          %s2620 = scalar_lea.hbm %s13, %s2619
          %s2621 = sshll.u32 %s2607, 4
          %s2622 = int_to_ptr.vmem [resolvable:$true] %s2621
          %s2623 = sshll.u32 %s2620, 4
          %s2624 = int_to_ptr.hbm [resolvable:$true] %s2623
          %2629 = dma.vmem_to_hbm [thread:$0]  %s2622, 256, %s2624, %s2604, 128, 128, 8
        $region96: #{tpu_custom_call.1} parent=71 // pred_fallthru
          _
        // Predicated region
        $region97: #{tpu_custom_call.1} parent=71 // pred_check
          %p2630 = pneg %p439
        $region98: #{tpu_custom_call.1} parent=71 // pred_check_branch
          %2632 = sbr.rel (%p2630) target = $region100
        $region99: #{tpu_custom_call.1} parent=71 // pred_region
          %s2633 = smul.u32 %s46, 2
          %s2634 = sadd.s32 %s2633, %s45
          %s2635 = smul.u32 2, %s2634
          %2637 = vsyncadd %s2609, 0
          %s2638 = smul.addr %s2635, 4
          %s2639 = smul.addr %s2638, 4
          %s2640 = scalar_lea.hbm %s14, %s2639
          %s2641 = sshll.u32 %s2612, 4
          %s2642 = int_to_ptr.vmem [resolvable:$true] %s2641
          %s2643 = sshll.u32 %s2640, 4
          %s2644 = int_to_ptr.hbm [resolvable:$true] %s2643
          %2649 = dma.vmem_to_hbm [thread:$0]  %s2642, 512, %s2644, %s2609, 64, 64, 4
        $region100: #{tpu_custom_call.1} parent=71 // pred_fallthru
          _
      $region72: #{tpu_custom_call.1} parent=5 // pred_fallthru
        _
      %p2650 = scmp.le.s32.totalorder 2, %s36
      // Predicated region
      $region101: #{tpu_custom_call.1} parent=5 // pred_check
        %p2651 = pneg %p2650
      $region102: #{tpu_custom_call.1} parent=5 // pred_check_branch
        %2653 = sbr.rel (%p2651) target = $region104
      $region103: #{tpu_custom_call.1} parent=5 // pred_region
        %s2654 = ssub.s32 %s36, 2
        // Predicated region
        $region105: #{tpu_custom_call.1} parent=103 // pred_check
          %p2655 = pneg %p415
        $region106: #{tpu_custom_call.1} parent=103 // pred_check_branch
          %2657 = sbr.rel (%p2655) target = $region108
        $region107: #{tpu_custom_call.1} parent=103 // pred_region
          %s2658 = sand.u32 %s400, 1
          %s2659 = scalar_lea.sflag [#allocation4], %s2658
          %s2660 = sand.u32 %s400, 1
          %s2661 = smul.addr %s2660, 16
          %s2662 = scalar_lea.vmem [#allocation10], %s2661
          %2664 = dma.done %s2659, 256
        $region108: #{tpu_custom_call.1} parent=103 // pred_fallthru
          _
        // Predicated region
        $region109: #{tpu_custom_call.1} parent=103 // pred_check
          %p2665 = pneg %p445
        $region110: #{tpu_custom_call.1} parent=103 // pred_check_branch
          %2667 = sbr.rel (%p2665) target = $region112
        $region111: #{tpu_custom_call.1} parent=103 // pred_region
          %s2668 = sand.u32 %s430, 1
          %s2669 = scalar_lea.sflag [#allocation12], %s2668
          %s2670 = sand.u32 %s430, 1
          %s2671 = smul.addr %s2670, 32
          %s2672 = scalar_lea.vmem [#allocation11], %s2671
          %2674 = dma.done %s2669, 512
        $region112: #{tpu_custom_call.1} parent=103 // pred_fallthru
          _
      $region104: #{tpu_custom_call.1} parent=5 // pred_fallthru
        _
    $region6: #{tpu_custom_call.1} parent=1 // loop_footer
      %s40 = sadd.s32 1, %s36
    $region7: #{tpu_custom_call.1} parent=1 // loop_footer_branch
      %35 = sbr.rel target = $region3
    $region8: #{tpu_custom_call.1} parent=1 // loop_exit
      _
    %2675 = vsyncpa [#allocation3], 1
    %s2676 = scalar_lea.sflag [#allocation3], 1
    %2677 = vsyncpa %s2676, 1
    %2678 = vsyncpa [#allocation6], 1
    %s2679 = scalar_lea.sflag [#allocation6], 1
    %2680 = vsyncpa %s2679, 1
    %2681 = vsyncpa [#allocation9], 1
    %s2682 = scalar_lea.sflag [#allocation9], 1
    %2683 = vsyncpa %s2682, 1
    %2684 = vsyncpa [#allocation4], 1
    %s2685 = scalar_lea.sflag [#allocation4], 1
    %2686 = vsyncpa %s2685, 1
    %2687 = vsyncpa [#allocation12], 1
    %s2688 = scalar_lea.sflag [#allocation12], 1
    %2689 = vsyncpa %s2688, 1

</llo_original>
